<compile_context>
chip_gen: v5e
topology: v5e:2x2
jax: 0.10.0
libtpu: 0.0.40
codegen_flags: <defaults>
</compile_context>

<pallas_src>
import functools

import jax
import jax.numpy as jnp
from jax import lax
from jax.experimental import pallas as pl
from jax.experimental.pallas import tpu as pltpu


# ----------------------------------------------------------------------------
# Kernel 1: fused QKV projection -> head-major bf16 q/k/v (q pre-scaled).
# ----------------------------------------------------------------------------
def _qkv_proj_kernel(x_ref, w_ref, q_ref, k_ref, v_ref, *, num_heads, head_dim):
    # x_ref: (1, bn, C) bf16
    # w_ref: (C, 3C) bf16; columns grouped [q | k | v] x head x hd, q pre-scaled
    # q/k/v_ref: (1, H, bn, hd) bf16
    C = num_heads * head_dim
    # One wide MXU matmul (bf16 feed, f32 accumulation) instead of 3*H small ones.
    y = jnp.dot(x_ref[0], w_ref[...],
                preferred_element_type=jnp.float32).astype(jnp.bfloat16)  # (bn, 3C)
    for h in range(num_heads):                       # H small & static
        q_ref[0, h] = y[:, 0 * C + h * head_dim: 0 * C + (h + 1) * head_dim]
        k_ref[0, h] = y[:, 1 * C + h * head_dim: 1 * C + (h + 1) * head_dim]
        v_ref[0, h] = y[:, 2 * C + h * head_dim: 2 * C + (h + 1) * head_dim]


# ----------------------------------------------------------------------------
# Kernel 2: flash attention (online softmax) + fused output projection.
# grid = (B, q_tiles, H, kv_tiles).  Per-head normalized ctx goes into its
# lane slice of a (block_q, C) bf16 scratch; the (1, block_q, C) output block
# is written exactly once, at the last (head, kv) step, as ctx @ Wproj^T + b.
# ----------------------------------------------------------------------------
def _flash_attn_proj_kernel(q_ref, k_ref, v_ref, wp_ref, b_ref, o_ref,
                            m_sc, l_sc, acc_sc, ctx_sc, *, num_heads, head_dim):
    h = pl.program_id(2)
    ki = pl.program_id(3)
    kv_last = pl.num_programs(3) - 1

    # fresh online-softmax state for every (batch, q_tile, head)
    @pl.when(ki == 0)
    def _():
        m_sc[...] = jnp.full_like(m_sc, -jnp.inf)
        l_sc[...] = jnp.zeros_like(l_sc)
        acc_sc[...] = jnp.zeros_like(acc_sc)

    q = q_ref[0, 0]            # (bq, hd)  bf16, already scaled by 1/sqrt(hd)
    k = k_ref[0, 0]            # (bkv, hd) bf16
    v = v_ref[0, 0]            # (bkv, hd) bf16

    # scores (bq, bkv): bf16 MXU feed, f32 accumulation; contraction dim = hd
    s = lax.dot_general(q, k, (((1,), (1,)), ((), ())),
                        preferred_element_type=jnp.float32)

    m_prev = m_sc[...]                                           # (bq, 1)
    m_new = jnp.maximum(m_prev, jnp.max(s, axis=-1, keepdims=True))
    alpha = jnp.exp(m_prev - m_new)                              # rescale factor
    p = jnp.exp(s - m_new)                                       # (bq, bkv) f32
    l_sc[...] = alpha * l_sc[...] + jnp.sum(p, axis=-1, keepdims=True)
    acc_sc[...] = alpha * acc_sc[...] + jnp.dot(
        p.astype(jnp.bfloat16), v, preferred_element_type=jnp.float32)
    m_sc[...] = m_new

    @pl.when(ki == kv_last)
    def _():
        # normalize this head's context and park it in its lane slice of ctx_sc
        ctx = (acc_sc[...] * pl.reciprocal(l_sc[...], approx=True)
               ).astype(ctx_sc.dtype)                            # (bq, hd)
        # static per-head branches -> static (lane-aligned for hd=128) slices
        for hh in range(num_heads):
            @pl.when(h == hh)
            def _(hh=hh):
                ctx_sc[:, hh * head_dim:(hh + 1) * head_dim] = ctx

        # last head: single full-C-deep projection + bias, write output once
        @pl.when(h == num_heads - 1)
        def _():
            out = jnp.dot(ctx_sc[...], wp_ref[...],
                          preferred_element_type=jnp.float32)    # (bq, C) f32
            out = out + b_ref[...]                               # bias (1, C)
            o_ref[0] = out.astype(o_ref.dtype)


# ----------------------------------------------------------------------------
# Wrapper
# ----------------------------------------------------------------------------
def attention2_forward(x, wqkv, wproj, bproj, num_heads,
                       *, block_q=256, block_kv=512, block_n=512):
    """x: (B, N, C) f32; wqkv: (3C, C); wproj: (C, C); bproj: (C,)."""
    B, N, C = x.shape
    H = num_heads
    hd = C // H
    assert H * hd == C
    scale = hd ** (-0.5)

    block_q = min(block_q, N)
    block_kv = min(block_kv, N)
    block_n = min(block_n, N)
    assert N % block_q == 0 and N % block_kv == 0 and N % block_n == 0
    # TODO(synk): add -inf key masking on the last kv tile to support N not
    # divisible by the tile sizes (e.g. ViT's N=197).
    # TODO(synk): for head_dim < 128, pack two heads per lane block (or slice
    # per head out of a (B, N, C) layout via index maps) to avoid lane-sparse
    # masked loads/stores; hd=128 here keeps the lane dim full.

    # ---- weight-only re-layout (tiny; activations never transposed in XLA) ----
    # (3C, C) -> (C, 3*H*hd): columns grouped q|k|v then head; fold qk scale
    # into the q columns (free).
    w = wqkv.reshape(3, H, hd, C)
    w = w.at[0].multiply(scale)
    w_wide = jnp.transpose(w, (3, 0, 1, 2)).reshape(C, 3 * C).astype(jnp.bfloat16)
    wproj_t = wproj.T.astype(jnp.bfloat16)            # (C, C): out = ctx @ wproj_t
    bias2 = bproj.reshape(1, C).astype(jnp.float32)
    x_bf = x.astype(jnp.bfloat16)                     # halve x HBM->VMEM traffic

    # Actual per-step footprint is a few MiB; 48 MiB leaves headroom below the
    # 64 MiB physical per-TC VMEM on v7x (and is trivially fine on v5e/v6e).
    vmem_limit = 48 * 1024 * 1024

    # ---- kernel 1: QKV projection -> head-major bf16 q/k/v -------------------
    n_tiles = N // block_n
    qkv_shape = jax.ShapeDtypeStruct((B, H, N, hd), jnp.bfloat16)
    q, k, v = pl.pallas_call(
        functools.partial(_qkv_proj_kernel, num_heads=H, head_dim=hd),
        out_shape=(qkv_shape, qkv_shape, qkv_shape),
        grid_spec=pltpu.PrefetchScalarGridSpec(
            num_scalar_prefetch=0,
            grid=(B, n_tiles),
            in_specs=[
                pl.BlockSpec((1, block_n, C), lambda b, i: (b, i, 0)),
                # grid-constant weight: single buffer (no redundant 2nd copy)
                pl.BlockSpec((C, 3 * C), lambda b, i: (0, 0),
                             pipeline_mode=pl.Buffered(1)),
            ],
            out_specs=[
                pl.BlockSpec((1, H, block_n, hd), lambda b, i: (b, 0, i, 0)),
                pl.BlockSpec((1, H, block_n, hd), lambda b, i: (b, 0, i, 0)),
                pl.BlockSpec((1, H, block_n, hd), lambda b, i: (b, 0, i, 0)),
            ],
        ),
        compiler_params=pltpu.CompilerParams(
            dimension_semantics=("parallel", "parallel"),
            vmem_limit_bytes=vmem_limit),
    )(x_bf, w_wide)

    # ---- kernel 2: flash attention + fused output projection -----------------
    n_q = N // block_q
    n_kv = N // block_kv
    out = pl.pallas_call(
        functools.partial(_flash_attn_proj_kernel, num_heads=H, head_dim=hd),
        out_shape=jax.ShapeDtypeStruct((B, N, C), x.dtype),
        grid_spec=pltpu.PrefetchScalarGridSpec(
            num_scalar_prefetch=0,
            grid=(B, n_q, H, n_kv),
            in_specs=[
                pl.BlockSpec((1, 1, block_q, hd),
                             lambda b, qi, h, ki: (b, h, qi, 0)),
                pl.BlockSpec((1, 1, block_kv, hd),
                             lambda b, qi, h, ki: (b, h, ki, 0)),
                pl.BlockSpec((1, 1, block_kv, hd),
                             lambda b, qi, h, ki: (b, h, ki, 0)),
                # full Wproj^T, grid-constant: staged once, single buffer
                pl.BlockSpec((C, C), lambda b, qi, h, ki: (0, 0),
                             pipeline_mode=pl.Buffered(1)),
                # grid-constant bias: single buffer
                pl.BlockSpec((1, C), lambda b, qi, h, ki: (0, 0),
                             pipeline_mode=pl.Buffered(1)),
            ],
            out_specs=pl.BlockSpec((1, block_q, C),
                                   lambda b, qi, h, ki: (b, qi, 0)),
            scratch_shapes=[
                pltpu.VMEM((block_q, 1), jnp.float32),     # m (running max)
                pltpu.VMEM((block_q, 1), jnp.float32),     # l (running denom)
                pltpu.VMEM((block_q, hd), jnp.float32),    # acc (unnormalized ctx)
                pltpu.VMEM((block_q, C), jnp.bfloat16),    # per-head ctx slab
            ],
        ),
        compiler_params=pltpu.CompilerParams(
            dimension_semantics=("parallel", "parallel", "arbitrary", "arbitrary"),
            vmem_limit_bytes=vmem_limit),
    )(q, k, v, wproj_t, bias2)
    return out


# ----------------------------------------------------------------------------
# Pure-JAX reference (mirrors the torch forward exactly, in f32)
# ----------------------------------------------------------------------------
def attention2_reference(x, wqkv, wproj, bproj, num_heads):
    B, N, C = x.shape
    H = num_heads
    hd = C // H
    scale = hd ** (-0.5)
    qkv = (x @ wqkv.T).reshape(B, N, 3, H, hd).transpose(2, 0, 3, 1, 4)
    q, k, v = qkv[0], qkv[1], qkv[2]
    s = jnp.einsum("bhqd,bhkd->bhqk", q, k) * scale
    p = jax.nn.softmax(s, axis=-1)
    ctx = jnp.einsum("bhqk,bhkd->bhqd", p, v)
    ctx = ctx.transpose(0, 2, 1, 3).reshape(B, N, C)
    return ctx @ wproj.T + bproj


if __name__ == "__main__":
    # head_dim=128 keeps the lane dim full; N=512 exercises multi-tile grids.
    B, N, C, H = 2, 512, 256, 2

    key = jax.random.PRNGKey(0)
    kx, kw1, kw2, kb = jax.random.split(key, 4)
    x = jax.random.normal(kx, (B, N, C), dtype=jnp.float32)
    wqkv = jax.random.normal(kw1, (3 * C, C), dtype=jnp.float32) * 0.05
    wproj = jax.random.normal(kw2, (C, C), dtype=jnp.float32) * 0.05
    bproj = jax.random.normal(kb, (C,), dtype=jnp.float32) * 0.05

    ref = attention2_reference(x, wqkv, wproj, bproj, H)

    # (a) small tiles: exercises multi-kv-tile online softmax, multi-head ctx
    #     lane slices, multiple q tiles, and multiple kernel-1 N tiles.
    out_small = attention2_forward(x, wqkv, wproj, bproj, H,
                                   block_q=128, block_kv=256, block_n=256)
    out_small = jax.block_until_ready(out_small)
    assert out_small.shape == (B, N, C)
    err_small = float(jnp.max(jnp.abs(out_small - ref)))
    # bf16 MXU feeds with f32 accumulation -> relaxed tolerance vs f32 reference
    assert jnp.allclose(out_small, ref, atol=2e-2, rtol=2e-2), err_small

    # (b) default (performance) tiles, clamped to N.
    out_big = attention2_forward(x, wqkv, wproj, bproj, H)
    out_big = jax.block_until_ready(out_big)
    err_big = float(jnp.max(jnp.abs(out_big - ref)))
    assert jnp.allclose(out_big, ref, atol=2e-2, rtol=2e-2), err_big

    print("KERNEL_OK")
</pallas_src>

<mosaic_0001>
module attributes {stable_mosaic.version = 11 : i64} {
  func.func @_qkv_proj_kernel(%arg0: i32, %arg1: i32, %arg2: memref<1x256x256xbf16, #tpu.memory_space<vmem>>, %arg3: memref<256x768xbf16, #tpu.memory_space<vmem>>, %arg4: memref<1x2x256x128xbf16, #tpu.memory_space<vmem>>, %arg5: memref<1x2x256x128xbf16, #tpu.memory_space<vmem>>, %arg6: memref<1x2x256x128xbf16, #tpu.memory_space<vmem>>) attributes {dimension_semantics = [#tpu.dimension_semantics<parallel>, #tpu.dimension_semantics<parallel>], iteration_bounds = array<i64: 2, 2>, scalar_prefetch = 0 : i64, scratch_operands = 0 : i64, tpu.core_type = #tpu.core_type<tc>, window_params = [{transform_indices = @transform_0, window_bounds = array<i64: 1, 256, 256>}, {pipeline_mode = #tpu.pipeline_mode<synchronous>, transform_indices = @transform_1, window_bounds = array<i64: 256, 768>}, {transform_indices = @transform_2, window_bounds = array<i64: 1, 2, 256, 128>}, {transform_indices = @transform_3, window_bounds = array<i64: 1, 2, 256, 128>}, {transform_indices = @transform_4, window_bounds = array<i64: 1, 2, 256, 128>}]} {
    %c0 = arith.constant 0 : index
    %c0_0 = arith.constant 0 : index
    %c0_1 = arith.constant 0 : index
    %0 = vector.load %arg2[%c0, %c0_0, %c0_1] : memref<1x256x256xbf16, #tpu.memory_space<vmem>>, vector<1x256x256xbf16>
    %1 = vector.shape_cast %0 : vector<1x256x256xbf16> to vector<256x256xbf16>
    %c0_2 = arith.constant 0 : index
    %c0_3 = arith.constant 0 : index
    %2 = vector.load %arg3[%c0_2, %c0_3] : memref<256x768xbf16, #tpu.memory_space<vmem>>, vector<256x768xbf16>
    %cst = arith.constant dense<0.000000e+00> : vector<256x768xf32>
    %3 = tpu.matmul %1, %2, %cst {dimension_numbers = #tpu.dot_dimension_numbers<[1], [0], [0], [1], [0, 0, 1, 1], [], []>} : vector<256x256xbf16>, vector<256x768xbf16>, vector<256x768xf32> -> vector<256x768xf32>
    %4 = arith.truncf %3 : vector<256x768xf32> to vector<256x768xbf16>
    %5 = vector.extract_strided_slice %4 {offsets = [0, 0], sizes = [256, 128], strides = [1, 1]} : vector<256x768xbf16> to vector<256x128xbf16>
    %c0_4 = arith.constant 0 : index
    %c0_5 = arith.constant 0 : index
    %c0_6 = arith.constant 0 : index
    %c0_7 = arith.constant 0 : index
    %6 = vector.load %arg4[%c0_4, %c0_5, %c0_6, %c0_7] : memref<1x2x256x128xbf16, #tpu.memory_space<vmem>>, vector<1x1x256x128xbf16>
    %7 = vector.shape_cast %6 : vector<1x1x256x128xbf16> to vector<256x128xbf16>
    %8 = vector.shape_cast %5 : vector<256x128xbf16> to vector<1x1x256x128xbf16>
    tpu.vector_store %arg4[%c0_4, %c0_5, %c0_6, %c0_7], %8 {strides = array<i32>} : memref<1x2x256x128xbf16, #tpu.memory_space<vmem>>, vector<1x1x256x128xbf16>,
    %9 = vector.extract_strided_slice %4 {offsets = [0, 256], sizes = [256, 128], strides = [1, 1]} : vector<256x768xbf16> to vector<256x128xbf16>
    %c0_8 = arith.constant 0 : index
    %c0_9 = arith.constant 0 : index
    %c0_10 = arith.constant 0 : index
    %c0_11 = arith.constant 0 : index
    %10 = vector.load %arg5[%c0_8, %c0_9, %c0_10, %c0_11] : memref<1x2x256x128xbf16, #tpu.memory_space<vmem>>, vector<1x1x256x128xbf16>
    %11 = vector.shape_cast %10 : vector<1x1x256x128xbf16> to vector<256x128xbf16>
    %12 = vector.shape_cast %9 : vector<256x128xbf16> to vector<1x1x256x128xbf16>
    tpu.vector_store %arg5[%c0_8, %c0_9, %c0_10, %c0_11], %12 {strides = array<i32>} : memref<1x2x256x128xbf16, #tpu.memory_space<vmem>>, vector<1x1x256x128xbf16>,
    %13 = vector.extract_strided_slice %4 {offsets = [0, 512], sizes = [256, 128], strides = [1, 1]} : vector<256x768xbf16> to vector<256x128xbf16>
    %c0_12 = arith.constant 0 : index
    %c0_13 = arith.constant 0 : index
    %c0_14 = arith.constant 0 : index
    %c0_15 = arith.constant 0 : index
    %14 = vector.load %arg6[%c0_12, %c0_13, %c0_14, %c0_15] : memref<1x2x256x128xbf16, #tpu.memory_space<vmem>>, vector<1x1x256x128xbf16>
    %15 = vector.shape_cast %14 : vector<1x1x256x128xbf16> to vector<256x128xbf16>
    %16 = vector.shape_cast %13 : vector<256x128xbf16> to vector<1x1x256x128xbf16>
    tpu.vector_store %arg6[%c0_12, %c0_13, %c0_14, %c0_15], %16 {strides = array<i32>} : memref<1x2x256x128xbf16, #tpu.memory_space<vmem>>, vector<1x1x256x128xbf16>,
    %17 = vector.extract_strided_slice %4 {offsets = [0, 128], sizes = [256, 128], strides = [1, 1]} : vector<256x768xbf16> to vector<256x128xbf16>
    %c0_16 = arith.constant 0 : index
    %c1 = arith.constant 1 : index
    %c0_17 = arith.constant 0 : index
    %c0_18 = arith.constant 0 : index
    %18 = vector.load %arg4[%c0_16, %c1, %c0_17, %c0_18] : memref<1x2x256x128xbf16, #tpu.memory_space<vmem>>, vector<1x1x256x128xbf16>
    %19 = vector.shape_cast %18 : vector<1x1x256x128xbf16> to vector<256x128xbf16>
    %20 = vector.shape_cast %17 : vector<256x128xbf16> to vector<1x1x256x128xbf16>
    tpu.vector_store %arg4[%c0_16, %c1, %c0_17, %c0_18], %20 {strides = array<i32>} : memref<1x2x256x128xbf16, #tpu.memory_space<vmem>>, vector<1x1x256x128xbf16>,
    %21 = vector.extract_strided_slice %4 {offsets = [0, 384], sizes = [256, 128], strides = [1, 1]} : vector<256x768xbf16> to vector<256x128xbf16>
    %c0_19 = arith.constant 0 : index
    %c1_20 = arith.constant 1 : index
    %c0_21 = arith.constant 0 : index
    %c0_22 = arith.constant 0 : index
    %22 = vector.load %arg5[%c0_19, %c1_20, %c0_21, %c0_22] : memref<1x2x256x128xbf16, #tpu.memory_space<vmem>>, vector<1x1x256x128xbf16>
    %23 = vector.shape_cast %22 : vector<1x1x256x128xbf16> to vector<256x128xbf16>
    %24 = vector.shape_cast %21 : vector<256x128xbf16> to vector<1x1x256x128xbf16>
    tpu.vector_store %arg5[%c0_19, %c1_20, %c0_21, %c0_22], %24 {strides = array<i32>} : memref<1x2x256x128xbf16, #tpu.memory_space<vmem>>, vector<1x1x256x128xbf16>,
    %25 = vector.extract_strided_slice %4 {offsets = [0, 640], sizes = [256, 128], strides = [1, 1]} : vector<256x768xbf16> to vector<256x128xbf16>
    %c0_23 = arith.constant 0 : index
    %c1_24 = arith.constant 1 : index
    %c0_25 = arith.constant 0 : index
    %c0_26 = arith.constant 0 : index
    %26 = vector.load %arg6[%c0_23, %c1_24, %c0_25, %c0_26] : memref<1x2x256x128xbf16, #tpu.memory_space<vmem>>, vector<1x1x256x128xbf16>
    %27 = vector.shape_cast %26 : vector<1x1x256x128xbf16> to vector<256x128xbf16>
    %28 = vector.shape_cast %25 : vector<256x128xbf16> to vector<1x1x256x128xbf16>
    tpu.vector_store %arg6[%c0_23, %c1_24, %c0_25, %c0_26], %28 {strides = array<i32>} : memref<1x2x256x128xbf16, #tpu.memory_space<vmem>>, vector<1x1x256x128xbf16>,
    return
  }
  func.func @transform_0(%arg0: i32, %arg1: i32) -> (i32, i32, i32) {
    %c0_i32 = arith.constant 0 : i32
    %c0_i32_0 = arith.constant 0 : i32
    return %arg0, %arg1, %c0_i32 : i32, i32, i32
  }
  func.func @transform_1(%arg0: i32, %arg1: i32) -> (i32, i32) {
    %c0_i32 = arith.constant 0 : i32
    %c0_i32_0 = arith.constant 0 : i32
    %c0_i32_1 = arith.constant 0 : i32
    return %c0_i32, %c0_i32_0 : i32, i32
  }
  func.func @transform_2(%arg0: i32, %arg1: i32) -> (i32, i32, i32, i32) {
    %c0_i32 = arith.constant 0 : i32
    %c0_i32_0 = arith.constant 0 : i32
    %c0_i32_1 = arith.constant 0 : i32
    return %arg0, %c0_i32, %arg1, %c0_i32_0 : i32, i32, i32, i32
  }
  func.func @transform_3(%arg0: i32, %arg1: i32) -> (i32, i32, i32, i32) {
    %c0_i32 = arith.constant 0 : i32
    %c0_i32_0 = arith.constant 0 : i32
    %c0_i32_1 = arith.constant 0 : i32
    return %arg0, %c0_i32, %arg1, %c0_i32_0 : i32, i32, i32, i32
  }
  func.func @transform_4(%arg0: i32, %arg1: i32) -> (i32, i32, i32, i32) {
    %c0_i32 = arith.constant 0 : i32
    %c0_i32_0 = arith.constant 0 : i32
    %c0_i32_1 = arith.constant 0 : i32
    return %arg0, %c0_i32, %arg1, %c0_i32_0 : i32, i32, i32, i32
  }
}

</mosaic_0001>

<llo_original>
// kernel: tpu_custom_call.1
$region0: #{tpu_custom_call.1}
  #allocation0 [shape = 'u32[]', space=smem, size = 0x4, offset = 0x4, fixed_abs, tag = 'smem constant byte address 0x4 - core index']
  #allocation1 [shape = 'u32[72,128]{1,0:T(1,128)}', space=vmem, size = 0x9000, scoped, tag = 'internal scratch']
  #allocation11 [shape = 's32[]', space=sflag, size = 0x4, offset = 0, fixed_abs, tag = 'sflag constant byte address 0x0 - dummy sync flag']
  #allocation13 [shape = 's32[]', space=sflag, size = 0x4, offset = 0, fixed_abs, tag = 'sflag constant byte address 0x0 - dummy sync flag']
  #allocation15 [shape = 's32[]', space=sflag, size = 0x4, offset = 0, fixed_abs, tag = 'sflag constant byte address 0x0 - dummy sync flag']
  %s0 = inlined_call_operand.hbm [shape: bf16[2,512,256], index: 0, kind: input, shape index: {}]
  %s1 = inlined_call_operand.hbm [shape: bf16[256,768], index: 1, kind: input, shape index: {}]
  %s2 = inlined_call_operand.hbm [shape: bf16[2,2,512,128], index: 2, kind: output, shape index: {0}]
  %s3 = inlined_call_operand.hbm [shape: bf16[2,2,512,128], index: 3, kind: output, shape index: {1}]
  %s4 = inlined_call_operand.hbm [shape: bf16[2,2,512,128], index: 4, kind: output, shape index: {2}]
  %5 = xla_tuple %s2, %s3, %s4
  %s6 = sld [smem:[#allocation0]]
  $region65: #{tpu_custom_call.1} parent=0
    _
  %s8 = ssub.s32 1, %s6
  %s9 = scalar_select 0, %s8, %s6
  $region1: #{tpu_custom_call.1} parent=0
    #allocation2 [shape = 'u8[262144]{0}', space=vmem, size = 0x40000, scoped, tag = 'input window, operand 0']
    #allocation3 [shape = 's32[2]{0}', space=sflag, size = 0x8, scoped, tag = 'scoped memory for tpu_custom_call.1']
    #allocation4 [shape = 's32[2]{0}', space=sflag, size = 0x8, scoped, tag = 'scoped memory for tpu_custom_call.1']
    #allocation5 [shape = 'u8[393216]{0}', space=vmem, size = 0x60000, scoped, tag = 'input window, operand 1, single buffered']
    #allocation6 [shape = 's32[1]{0}', space=sflag, size = 0x4, scoped, tag = 'scoped memory for tpu_custom_call.1']
    #allocation7 [shape = 'u8[262144]{0}', space=vmem, size = 0x40000, scoped, tag = 'output window, operand 0']
    #allocation8 [shape = 'u8[262144]{0}', space=vmem, size = 0x40000, scoped, tag = 'output window, operand 1']
    #allocation9 [shape = 's32[2]{0}', space=sflag, size = 0x8, scoped, tag = 'scoped memory for tpu_custom_call.1']
    #allocation10 [shape = 'u8[262144]{0}', space=vmem, size = 0x40000, scoped, tag = 'output window, operand 2']
    %10 = vsyncpa [#allocation3], 0
    %s11 = scalar_lea.sflag [#allocation3], 1
    %12 = vsyncpa %s11, 0
    %13 = vsyncpa [#allocation6], 0
    %14 = vsyncpa [#allocation4], 0
    %s15 = scalar_lea.sflag [#allocation4], 1
    %16 = vsyncpa %s15, 0
    %17 = vsyncpa [#allocation9], 0
    %s18 = scalar_lea.sflag [#allocation9], 1
    %19 = vsyncpa %s18, 0
    loop: start=0, step=1, limit=6
    $region2: #{tpu_custom_call.1} parent=1 // loop_pre_header
      _
    $region3: #{tpu_custom_call.1} parent=1 // loop_header
      %s21 = sphi 0, %s25
      %p22 = scmp.ge.s32.totalorder %s21, 6
      %s28 = sphi 0, %s40
      %s29 = sphi 0, %s36
      %s30 = sphi 0, %s28
      %s31 = sphi 0, %s29
      %s32 = sphi 0, %s30
      %s33 = sphi 0, %s31
      %s45 = sphi 0, %s47
      %s48 = sphi 0, %s45
      %s49 = sphi 0, %s48
      %s65 = sphi 0, %s49
      %s69 = sphi 0, %s69
      %s71 = sphi 0, %s69
      %s72 = sphi 0, %s71
      %s86 = sphi 0, %s72
      %s94 = sphi 0, %s96
      %s97 = sphi 0, %s94
      %s98 = sphi 0, %s97
      %s114 = sphi 0, %s98
      %s122 = sphi 0, %s124
      %s125 = sphi 0, %s122
      %s126 = sphi 0, %s125
      %s142 = sphi 0, %s126
      %s150 = sphi 0, %s152
      %s153 = sphi 0, %s150
      %s154 = sphi 0, %s153
      %s170 = sphi 0, %s154
    $region4: #{tpu_custom_call.1} parent=1 // loop_header_branch
      %24 = sbr.rel (%p22) target = $region8
    $region5: #{tpu_custom_call.1} parent=1 // loop_body
      %s26 = ssub.s32 %s21, 1
      %s27 = ssub.s32 %s21, 2
      %s34 = sadd.s32 1, %s29
      %p35 = scmp.ge.s32.totalorder %s34, 2
      %s36 = scalar_select %p35, 0, %s34
      %s37 = sadd.s32 1, %s28
      %s38 = scalar_select %p35, %s37, %s28
      %p39 = scmp.ge.s32.totalorder %s38, 2
      %s40 = scalar_select %p39, 0, %s38
      %s41 = ssub.s32 %s28, %s40
      %s42 = ssub.s32 %s29, %s36
      %s43 = sor.u32 %s41, %s42
      %p44 = scmp.eq.s32.totalorder %s43, 0
      %s46 = sadd.s32 %s45, 1
      %s47 = scalar_select %p44, %s45, %s46
      %p50 = pneg %p44
      %p51 = scmp.eq.s32.totalorder %s21, 3
      %p52 = por %p50, %p51
      %p53 = scmp.ne.s32.totalorder %s45, %s48
      %p54 = scmp.eq.s32.totalorder %s21, 0
      %p55 = por %p53, %p54
      %p56 = scmp.ne.s32.totalorder %s45, %s48
      %p57 = scmp.eq.s32.totalorder %s26, 3
      %p58 = por %p56, %p57
      %p59 = scmp.ne.s32.totalorder %s48, %s49
      %p60 = scmp.eq.s32.totalorder %s26, 0
      %p61 = por %p59, %p60
      %p62 = scmp.ne.s32.totalorder %s48, %s49
      %p63 = scmp.eq.s32.totalorder %s27, 3
      %p64 = por %p62, %p63
      %p66 = scmp.ne.s32.totalorder %s49, %s65
      %p67 = scmp.eq.s32.totalorder %s27, 0
      %p68 = por %p66, %p67
      %s70 = sadd.s32 %s69, 1
      %p73 = scmp.eq.s32.totalorder %s21, 3
      %p74 = scmp.ne.s32.totalorder %s69, %s71
      %p75 = scmp.eq.s32.totalorder %s21, 0
      %p76 = por %p74, %p75
      %p77 = scmp.ne.s32.totalorder %s69, %s71
      %p78 = scmp.eq.s32.totalorder %s26, 3
      %p79 = por %p77, %p78
      %p80 = scmp.ne.s32.totalorder %s71, %s72
      %p81 = scmp.eq.s32.totalorder %s26, 0
      %p82 = por %p80, %p81
      %p83 = scmp.ne.s32.totalorder %s71, %s72
      %p84 = scmp.eq.s32.totalorder %s27, 3
      %p85 = por %p83, %p84
      %p87 = scmp.ne.s32.totalorder %s72, %s86
      %p88 = scmp.eq.s32.totalorder %s27, 0
      %p89 = por %p87, %p88
      %s90 = ssub.s32 %s28, %s40
      %s91 = ssub.s32 %s29, %s36
      %s92 = sor.u32 %s90, %s91
      %p93 = scmp.eq.s32.totalorder %s92, 0
      %s95 = sadd.s32 %s94, 1
      %s96 = scalar_select %p93, %s94, %s95
      %p99 = pneg %p93
      %p100 = scmp.eq.s32.totalorder %s21, 3
      %p101 = por %p99, %p100
      %p102 = scmp.ne.s32.totalorder %s94, %s97
      %p103 = scmp.eq.s32.totalorder %s21, 0
      %p104 = por %p102, %p103
      %p105 = scmp.ne.s32.totalorder %s94, %s97
      %p106 = scmp.eq.s32.totalorder %s26, 3
      %p107 = por %p105, %p106
      %p108 = scmp.ne.s32.totalorder %s97, %s98
      %p109 = scmp.eq.s32.totalorder %s26, 0
      %p110 = por %p108, %p109
      %p111 = scmp.ne.s32.totalorder %s97, %s98
      %p112 = scmp.eq.s32.totalorder %s27, 3
      %p113 = por %p111, %p112
      %p115 = scmp.ne.s32.totalorder %s98, %s114
      %p116 = scmp.eq.s32.totalorder %s27, 0
      %p117 = por %p115, %p116
      %s118 = ssub.s32 %s28, %s40
      %s119 = ssub.s32 %s29, %s36
      %s120 = sor.u32 %s118, %s119
      %p121 = scmp.eq.s32.totalorder %s120, 0
      %s123 = sadd.s32 %s122, 1
      %s124 = scalar_select %p121, %s122, %s123
      %p127 = pneg %p121
      %p128 = scmp.eq.s32.totalorder %s21, 3
      %p129 = por %p127, %p128
      %p130 = scmp.ne.s32.totalorder %s122, %s125
      %p131 = scmp.eq.s32.totalorder %s21, 0
      %p132 = por %p130, %p131
      %p133 = scmp.ne.s32.totalorder %s122, %s125
      %p134 = scmp.eq.s32.totalorder %s26, 3
      %p135 = por %p133, %p134
      %p136 = scmp.ne.s32.totalorder %s125, %s126
      %p137 = scmp.eq.s32.totalorder %s26, 0
      %p138 = por %p136, %p137
      %p139 = scmp.ne.s32.totalorder %s125, %s126
      %p140 = scmp.eq.s32.totalorder %s27, 3
      %p141 = por %p139, %p140
      %p143 = scmp.ne.s32.totalorder %s126, %s142
      %p144 = scmp.eq.s32.totalorder %s27, 0
      %p145 = por %p143, %p144
      %s146 = ssub.s32 %s28, %s40
      %s147 = ssub.s32 %s29, %s36
      %s148 = sor.u32 %s146, %s147
      %p149 = scmp.eq.s32.totalorder %s148, 0
      %s151 = sadd.s32 %s150, 1
      %s152 = scalar_select %p149, %s150, %s151
      %p155 = pneg %p149
      %p156 = scmp.eq.s32.totalorder %s21, 3
      %p157 = por %p155, %p156
      %p158 = scmp.ne.s32.totalorder %s150, %s153
      %p159 = scmp.eq.s32.totalorder %s21, 0
      %p160 = por %p158, %p159
      %p161 = scmp.ne.s32.totalorder %s150, %s153
      %p162 = scmp.eq.s32.totalorder %s26, 3
      %p163 = por %p161, %p162
      %p164 = scmp.ne.s32.totalorder %s153, %s154
      %p165 = scmp.eq.s32.totalorder %s26, 0
      %p166 = por %p164, %p165
      %p167 = scmp.ne.s32.totalorder %s153, %s154
      %p168 = scmp.eq.s32.totalorder %s27, 3
      %p169 = por %p167, %p168
      %p171 = scmp.ne.s32.totalorder %s154, %s170
      %p172 = scmp.eq.s32.totalorder %s27, 0
      %p173 = por %p171, %p172
      %p174 = scmp.le.s32.totalorder 1, %s21
      %p175 = scmp.lt.s32.totalorder %s21, 5
      %p176 = pnand %p174, %p175
      %p177 = pneg %p176
      // Predicated region
      $region9: #{tpu_custom_call.1} parent=5 // pred_check
        _
      $region10: #{tpu_custom_call.1} parent=5 // pred_check_branch
        %179 = sbr.rel (%p176) target = $region12
      $region11: #{tpu_custom_call.1} parent=5 // pred_region
        %s180 = ssub.s32 %s21, 1
        // Predicated region
        $region13: #{tpu_custom_call.1} parent=11 // pred_check
          %p181 = pneg %p82
        $region14: #{tpu_custom_call.1} parent=11 // pred_check_branch
          %183 = sbr.rel (%p181) target = $region16
        $region15: #{tpu_custom_call.1} parent=11 // pred_region
          %185 = vsyncadd [#allocation6], 0
          %s186 = sshll.u32 %s1, 4
          %s187 = int_to_ptr.hbm [resolvable:$true] %s186
          %s188 = sshll.u32 [#allocation5], 4
          %s189 = int_to_ptr.vmem [resolvable:$true] %s188
          %194 = dma.hbm_to_vmem [thread:$0]  %s187, 12288, %s189, [#allocation6], 384, 384, 24
        $region16: #{tpu_custom_call.1} parent=11 // pred_fallthru
          _
      $region12: #{tpu_custom_call.1} parent=5 // pred_fallthru
        _
      %p195 = scmp.lt.s32.totalorder %s21, 4
      // Predicated region
      $region17: #{tpu_custom_call.1} parent=5 // pred_check
        %p196 = pneg %p195
      $region18: #{tpu_custom_call.1} parent=5 // pred_check_branch
        %198 = sbr.rel (%p196) target = $region20
      $region19: #{tpu_custom_call.1} parent=5 // pred_region
        // Predicated region
        $region21: #{tpu_custom_call.1} parent=19 // pred_check
          %p199 = pneg %p55
        $region22: #{tpu_custom_call.1} parent=19 // pred_check_branch
          %201 = sbr.rel (%p199) target = $region24
        $region23: #{tpu_custom_call.1} parent=19 // pred_region
          %s202 = sand.u32 %s45, 1
          %s203 = scalar_lea.sflag [#allocation3], %s202
          %s204 = sand.u32 %s45, 1
          %s205 = smul.addr %s204, 256
          %s206 = scalar_lea.vmem [#allocation2], %s205
          %s207 = smul.u32 32, %s29
          %209 = vsyncadd %s203, 0
          %s210 = smul.addr %s207, 2
          %s211 = smul.addr %s28, 128
          %s212 = sadd.s32 %s210, %s211
          %s213 = smul.addr %s212, 4
          %s214 = scalar_lea.hbm %s0, %s213
          %s215 = sshll.u32 %s214, 4
          %s216 = int_to_ptr.hbm [resolvable:$true] %s215
          %s217 = sshll.u32 %s206, 4
          %s218 = int_to_ptr.vmem [resolvable:$true] %s217
          %223 = dma.hbm_to_vmem [thread:$0]  %s216, 4096, %s218, %s203, 128, 128, 8
        $region24: #{tpu_custom_call.1} parent=19 // pred_fallthru
          _
      $region20: #{tpu_custom_call.1} parent=5 // pred_fallthru
        _
      %p224 = scmp.le.s32.totalorder 1, %s21
      %p225 = scmp.lt.s32.totalorder %s21, 5
      %p226 = pnand %p224, %p225
      %p227 = pneg %p226
      // Predicated region
      $region25: #{tpu_custom_call.1} parent=5 // pred_check
        _
      $region26: #{tpu_custom_call.1} parent=5 // pred_check_branch
        %229 = sbr.rel (%p226) target = $region28
      $region27: #{tpu_custom_call.1} parent=5 // pred_region
        %s230 = ssub.s32 %s21, 1
        %s231 = sand.u32 %s48, 1
        %s232 = scalar_lea.sflag [#allocation3], %s231
        %s233 = sand.u32 %s48, 1
        %s234 = smul.addr %s233, 256
        %s235 = scalar_lea.vmem [#allocation2], %s234
        // Predicated region
        $region29: #{tpu_custom_call.1} parent=27 // pred_check
          %p236 = pneg %p61
        $region30: #{tpu_custom_call.1} parent=27 // pred_check_branch
          %238 = sbr.rel (%p236) target = $region32
        $region31: #{tpu_custom_call.1} parent=27 // pred_region
          %240 = dma.done %s232, 4096
        $region32: #{tpu_custom_call.1} parent=27 // pred_fallthru
          _
        // Predicated region
        $region33: #{tpu_custom_call.1} parent=27 // pred_check
          %p241 = pneg %p82
        $region34: #{tpu_custom_call.1} parent=27 // pred_check_branch
          %243 = sbr.rel (%p241) target = $region36
        $region35: #{tpu_custom_call.1} parent=27 // pred_region
          %245 = dma.done [#allocation6], 12288
        $region36: #{tpu_custom_call.1} parent=27 // pred_fallthru
          _
        %s246 = sand.u32 %s48, 1
        %s247 = scalar_lea.sflag [#allocation3], %s246
        %s248 = sand.u32 %s48, 1
        %s249 = smul.addr %s248, 256
        %s250 = scalar_lea.vmem [#allocation2], %s249
        %p251 = pneg %p61
        %p252 = pneg %p58
        %p253 = pneg %p82
        %p254 = pneg %p79
        %p255 = pneg %p110
        %p256 = pneg %p107
        %s257 = sand.u32 %s97, 1
        %s258 = scalar_lea.sflag [#allocation4], %s257
        %s259 = sand.u32 %s97, 1
        %s260 = smul.addr %s259, 256
        %s261 = scalar_lea.vmem [#allocation7], %s260
        %p262 = pneg %p138
        %p263 = pneg %p135
        %s264 = sand.u32 %s26, 1
        %s265 = scalar_lea.sflag [#allocation9], %s264
        %s266 = sand.u32 %s125, 1
        %s267 = smul.addr %s266, 256
        %s268 = scalar_lea.vmem [#allocation8], %s267
        %p269 = pneg %p166
        %p270 = pneg %p163
        %s271 = sand.u32 %s26, 1
        %s272 = scalar_lea.sflag [#allocation9], %s271
        %s273 = sand.u32 %s153, 1
        %s274 = smul.addr %s273, 256
        %s275 = scalar_lea.vmem [#allocation10], %s274
        %s276 = smul.u32 32, %s31
        %s277 = smul.u32 32, %s31
        %s278 = smul.u32 32, %s31
        %s279 = smul.u32 32, %s31
        %v280 = vld [vmem:[%s235] sm:$0xff]
        %v281 = vld [vmem:[%s235 + $0x8] sm:$0xff]
        %v282 = vld [vmem:[%s235 + $0x10] sm:$0xff]
        %v283 = vld [vmem:[%s235 + $0x18] sm:$0xff]
        %v284 = vld [vmem:[%s235 + $0x20] sm:$0xff]
        %v285 = vld [vmem:[%s235 + $0x28] sm:$0xff]
        %v286 = vld [vmem:[%s235 + $0x30] sm:$0xff]
        %v287 = vld [vmem:[%s235 + $0x38] sm:$0xff]
        %v288 = vld [vmem:[%s235 + $0x40] sm:$0xff]
        %v289 = vld [vmem:[%s235 + $0x48] sm:$0xff]
        %v290 = vld [vmem:[%s235 + $0x50] sm:$0xff]
        %v291 = vld [vmem:[%s235 + $0x58] sm:$0xff]
        %v292 = vld [vmem:[%s235 + $0x60] sm:$0xff]
        %v293 = vld [vmem:[%s235 + $0x68] sm:$0xff]
        %v294 = vld [vmem:[%s235 + $0x70] sm:$0xff]
        %v295 = vld [vmem:[%s235 + $0x78] sm:$0xff]
        %v296 = vld [vmem:[%s235 + $0x80] sm:$0xff]
        %v297 = vld [vmem:[%s235 + $0x88] sm:$0xff]
        %v298 = vld [vmem:[%s235 + $0x90] sm:$0xff]
        %v299 = vld [vmem:[%s235 + $0x98] sm:$0xff]
        %v300 = vld [vmem:[%s235 + $0xa0] sm:$0xff]
        %v301 = vld [vmem:[%s235 + $0xa8] sm:$0xff]
        %v302 = vld [vmem:[%s235 + $0xb0] sm:$0xff]
        %v303 = vld [vmem:[%s235 + $0xb8] sm:$0xff]
        %v304 = vld [vmem:[%s235 + $0xc0] sm:$0xff]
        %v305 = vld [vmem:[%s235 + $0xc8] sm:$0xff]
        %v306 = vld [vmem:[%s235 + $0xd0] sm:$0xff]
        %v307 = vld [vmem:[%s235 + $0xd8] sm:$0xff]
        %v308 = vld [vmem:[%s235 + $0xe0] sm:$0xff]
        %v309 = vld [vmem:[%s235 + $0xe8] sm:$0xff]
        %v310 = vld [vmem:[%s235 + $0xf0] sm:$0xff]
        %v311 = vld [vmem:[%s235 + $0xf8] sm:$0xff]
        %v312 = vld [vmem:[#allocation5] sm:$0xff]
        %v313 = vld [vmem:[#allocation5 + $0x8] sm:$0xff]
        %v314 = vld [vmem:[#allocation5 + $0x10] sm:$0xff]
        %v315 = vld [vmem:[#allocation5 + $0x18] sm:$0xff]
        %v316 = vld [vmem:[#allocation5 + $0x20] sm:$0xff]
        %v317 = vld [vmem:[#allocation5 + $0x28] sm:$0xff]
        %v318 = vld [vmem:[#allocation5 + $0x30] sm:$0xff]
        %v319 = vld [vmem:[#allocation5 + $0x38] sm:$0xff]
        %v320 = vld [vmem:[#allocation5 + $0x40] sm:$0xff]
        %v321 = vld [vmem:[#allocation5 + $0x48] sm:$0xff]
        %v322 = vld [vmem:[#allocation5 + $0x50] sm:$0xff]
        %v323 = vld [vmem:[#allocation5 + $0x58] sm:$0xff]
        %v324 = vld [vmem:[#allocation5 + $0x60] sm:$0xff]
        %v325 = vld [vmem:[#allocation5 + $0x68] sm:$0xff]
        %v326 = vld [vmem:[#allocation5 + $0x70] sm:$0xff]
        %v327 = vld [vmem:[#allocation5 + $0x78] sm:$0xff]
        %v328 = vld [vmem:[#allocation5 + $0x80] sm:$0xff]
        %v329 = vld [vmem:[#allocation5 + $0x88] sm:$0xff]
        %v330 = vld [vmem:[#allocation5 + $0x90] sm:$0xff]
        %v331 = vld [vmem:[#allocation5 + $0x98] sm:$0xff]
        %v332 = vld [vmem:[#allocation5 + $0xa0] sm:$0xff]
        %v333 = vld [vmem:[#allocation5 + $0xa8] sm:$0xff]
        %v334 = vld [vmem:[#allocation5 + $0xb0] sm:$0xff]
        %v335 = vld [vmem:[#allocation5 + $0xb8] sm:$0xff]
        %v336 = vld [vmem:[#allocation5 + $0xc0] sm:$0xff]
        %v337 = vld [vmem:[#allocation5 + $0xc8] sm:$0xff]
        %v338 = vld [vmem:[#allocation5 + $0xd0] sm:$0xff]
        %v339 = vld [vmem:[#allocation5 + $0xd8] sm:$0xff]
        %v340 = vld [vmem:[#allocation5 + $0xe0] sm:$0xff]
        %v341 = vld [vmem:[#allocation5 + $0xe8] sm:$0xff]
        %v342 = vld [vmem:[#allocation5 + $0xf0] sm:$0xff]
        %v343 = vld [vmem:[#allocation5 + $0xf8] sm:$0xff]
        %v344 = vld [vmem:[#allocation5 + $0x100] sm:$0xff]
        %v345 = vld [vmem:[#allocation5 + $0x108] sm:$0xff]
        %v346 = vld [vmem:[#allocation5 + $0x110] sm:$0xff]
        %v347 = vld [vmem:[#allocation5 + $0x118] sm:$0xff]
        %v348 = vld [vmem:[#allocation5 + $0x120] sm:$0xff]
        %v349 = vld [vmem:[#allocation5 + $0x128] sm:$0xff]
        %v350 = vld [vmem:[#allocation5 + $0x130] sm:$0xff]
        %v351 = vld [vmem:[#allocation5 + $0x138] sm:$0xff]
        %v352 = vld [vmem:[#allocation5 + $0x140] sm:$0xff]
        %v353 = vld [vmem:[#allocation5 + $0x148] sm:$0xff]
        %v354 = vld [vmem:[#allocation5 + $0x150] sm:$0xff]
        %v355 = vld [vmem:[#allocation5 + $0x158] sm:$0xff]
        %v356 = vld [vmem:[#allocation5 + $0x160] sm:$0xff]
        %v357 = vld [vmem:[#allocation5 + $0x168] sm:$0xff]
        %v358 = vld [vmem:[#allocation5 + $0x170] sm:$0xff]
        %v359 = vld [vmem:[#allocation5 + $0x178] sm:$0xff]
        %v360 = vld [vmem:[#allocation5 + $0x180] sm:$0xff]
        %v361 = vld [vmem:[#allocation5 + $0x188] sm:$0xff]
        %v362 = vld [vmem:[#allocation5 + $0x190] sm:$0xff]
        %v363 = vld [vmem:[#allocation5 + $0x198] sm:$0xff]
        %v364 = vld [vmem:[#allocation5 + $0x1a0] sm:$0xff]
        %v365 = vld [vmem:[#allocation5 + $0x1a8] sm:$0xff]
        %v366 = vld [vmem:[#allocation5 + $0x1b0] sm:$0xff]
        %v367 = vld [vmem:[#allocation5 + $0x1b8] sm:$0xff]
        %v368 = vld [vmem:[#allocation5 + $0x1c0] sm:$0xff]
        %v369 = vld [vmem:[#allocation5 + $0x1c8] sm:$0xff]
        %v370 = vld [vmem:[#allocation5 + $0x1d0] sm:$0xff]
        %v371 = vld [vmem:[#allocation5 + $0x1d8] sm:$0xff]
        %v372 = vld [vmem:[#allocation5 + $0x1e0] sm:$0xff]
        %v373 = vld [vmem:[#allocation5 + $0x1e8] sm:$0xff]
        %v374 = vld [vmem:[#allocation5 + $0x1f0] sm:$0xff]
        %v375 = vld [vmem:[#allocation5 + $0x1f8] sm:$0xff]
        %v376 = vld [vmem:[#allocation5 + $0x200] sm:$0xff]
        %v377 = vld [vmem:[#allocation5 + $0x208] sm:$0xff]
        %v378 = vld [vmem:[#allocation5 + $0x210] sm:$0xff]
        %v379 = vld [vmem:[#allocation5 + $0x218] sm:$0xff]
        %v380 = vld [vmem:[#allocation5 + $0x220] sm:$0xff]
        %v381 = vld [vmem:[#allocation5 + $0x228] sm:$0xff]
        %v382 = vld [vmem:[#allocation5 + $0x230] sm:$0xff]
        %v383 = vld [vmem:[#allocation5 + $0x238] sm:$0xff]
        %v384 = vld [vmem:[#allocation5 + $0x240] sm:$0xff]
        %v385 = vld [vmem:[#allocation5 + $0x248] sm:$0xff]
        %v386 = vld [vmem:[#allocation5 + $0x250] sm:$0xff]
        %v387 = vld [vmem:[#allocation5 + $0x258] sm:$0xff]
        %v388 = vld [vmem:[#allocation5 + $0x260] sm:$0xff]
        %v389 = vld [vmem:[#allocation5 + $0x268] sm:$0xff]
        %v390 = vld [vmem:[#allocation5 + $0x270] sm:$0xff]
        %v391 = vld [vmem:[#allocation5 + $0x278] sm:$0xff]
        %v392 = vld [vmem:[#allocation5 + $0x280] sm:$0xff]
        %v393 = vld [vmem:[#allocation5 + $0x288] sm:$0xff]
        %v394 = vld [vmem:[#allocation5 + $0x290] sm:$0xff]
        %v395 = vld [vmem:[#allocation5 + $0x298] sm:$0xff]
        %v396 = vld [vmem:[#allocation5 + $0x2a0] sm:$0xff]
        %v397 = vld [vmem:[#allocation5 + $0x2a8] sm:$0xff]
        %v398 = vld [vmem:[#allocation5 + $0x2b0] sm:$0xff]
        %v399 = vld [vmem:[#allocation5 + $0x2b8] sm:$0xff]
        %v400 = vld [vmem:[#allocation5 + $0x2c0] sm:$0xff]
        %v401 = vld [vmem:[#allocation5 + $0x2c8] sm:$0xff]
        %v402 = vld [vmem:[#allocation5 + $0x2d0] sm:$0xff]
        %v403 = vld [vmem:[#allocation5 + $0x2d8] sm:$0xff]
        %v404 = vld [vmem:[#allocation5 + $0x2e0] sm:$0xff]
        %v405 = vld [vmem:[#allocation5 + $0x2e8] sm:$0xff]
        %v406 = vld [vmem:[#allocation5 + $0x2f0] sm:$0xff]
        %v407 = vld [vmem:[#allocation5 + $0x2f8] sm:$0xff]
        %v440 = vunpack.c.l.b16 %v280
        %v441 = vunpack.c.h.b16 %v280
        %v442 = vunpack.c.l.b16 %v281
        %v443 = vunpack.c.h.b16 %v281
        %v444 = vunpack.c.l.b16 %v282
        %v445 = vunpack.c.h.b16 %v282
        %v446 = vunpack.c.l.b16 %v283
        %v447 = vunpack.c.h.b16 %v283
        %v448 = vunpack.c.l.b16 %v284
        %v449 = vunpack.c.h.b16 %v284
        %v450 = vunpack.c.l.b16 %v285
        %v451 = vunpack.c.h.b16 %v285
        %v452 = vunpack.c.l.b16 %v286
        %v453 = vunpack.c.h.b16 %v286
        %v454 = vunpack.c.l.b16 %v287
        %v455 = vunpack.c.h.b16 %v287
        %v456 = vunpack.c.l.b16 %v288
        %v457 = vunpack.c.h.b16 %v288
        %v458 = vunpack.c.l.b16 %v289
        %v459 = vunpack.c.h.b16 %v289
        %v460 = vunpack.c.l.b16 %v290
        %v461 = vunpack.c.h.b16 %v290
        %v462 = vunpack.c.l.b16 %v291
        %v463 = vunpack.c.h.b16 %v291
        %v464 = vunpack.c.l.b16 %v292
        %v465 = vunpack.c.h.b16 %v292
        %v466 = vunpack.c.l.b16 %v293
        %v467 = vunpack.c.h.b16 %v293
        %v468 = vunpack.c.l.b16 %v294
        %v469 = vunpack.c.h.b16 %v294
        %v470 = vunpack.c.l.b16 %v295
        %v471 = vunpack.c.h.b16 %v295
        %v472 = vunpack.c.l.b16 %v296
        %v473 = vunpack.c.h.b16 %v296
        %v474 = vunpack.c.l.b16 %v297
        %v475 = vunpack.c.h.b16 %v297
        %v476 = vunpack.c.l.b16 %v298
        %v477 = vunpack.c.h.b16 %v298
        %v478 = vunpack.c.l.b16 %v299
        %v479 = vunpack.c.h.b16 %v299
        %v480 = vunpack.c.l.b16 %v300
        %v481 = vunpack.c.h.b16 %v300
        %v482 = vunpack.c.l.b16 %v301
        %v483 = vunpack.c.h.b16 %v301
        %v484 = vunpack.c.l.b16 %v302
        %v485 = vunpack.c.h.b16 %v302
        %v486 = vunpack.c.l.b16 %v303
        %v487 = vunpack.c.h.b16 %v303
        %v488 = vunpack.c.l.b16 %v304
        %v489 = vunpack.c.h.b16 %v304
        %v490 = vunpack.c.l.b16 %v305
        %v491 = vunpack.c.h.b16 %v305
        %v492 = vunpack.c.l.b16 %v306
        %v493 = vunpack.c.h.b16 %v306
        %v494 = vunpack.c.l.b16 %v307
        %v495 = vunpack.c.h.b16 %v307
        %v496 = vunpack.c.l.b16 %v308
        %v497 = vunpack.c.h.b16 %v308
        %v498 = vunpack.c.l.b16 %v309
        %v499 = vunpack.c.h.b16 %v309
        %v500 = vunpack.c.l.b16 %v310
        %v501 = vunpack.c.h.b16 %v310
        %v502 = vunpack.c.l.b16 %v311
        %v503 = vunpack.c.h.b16 %v311
        %v504 = vpack.c.b16 %v442, %v440
        %v505 = vpack.c.b16 %v443, %v441
        %v506 = vpack.c.b16 %v446, %v444
        %v507 = vpack.c.b16 %v447, %v445
        %v508 = vpack.c.b16 %v450, %v448
        %v509 = vpack.c.b16 %v451, %v449
        %v510 = vpack.c.b16 %v454, %v452
        %v511 = vpack.c.b16 %v455, %v453
        %v512 = vpack.c.b16 %v458, %v456
        %v513 = vpack.c.b16 %v459, %v457
        %v514 = vpack.c.b16 %v462, %v460
        %v515 = vpack.c.b16 %v463, %v461
        %v516 = vpack.c.b16 %v466, %v464
        %v517 = vpack.c.b16 %v467, %v465
        %v518 = vpack.c.b16 %v470, %v468
        %v519 = vpack.c.b16 %v471, %v469
        %v520 = vpack.c.b16 %v474, %v472
        %v521 = vpack.c.b16 %v475, %v473
        %v522 = vpack.c.b16 %v478, %v476
        %v523 = vpack.c.b16 %v479, %v477
        %v524 = vpack.c.b16 %v482, %v480
        %v525 = vpack.c.b16 %v483, %v481
        %v526 = vpack.c.b16 %v486, %v484
        %v527 = vpack.c.b16 %v487, %v485
        %v528 = vpack.c.b16 %v490, %v488
        %v529 = vpack.c.b16 %v491, %v489
        %v530 = vpack.c.b16 %v494, %v492
        %v531 = vpack.c.b16 %v495, %v493
        %v532 = vpack.c.b16 %v498, %v496
        %v533 = vpack.c.b16 %v499, %v497
        %v534 = vpack.c.b16 %v502, %v500
        %v535 = vpack.c.b16 %v503, %v501
        %v664 = vunpack.c.l.b16 %v312
        %v665 = vunpack.c.h.b16 %v312
        %v666 = vunpack.c.l.b16 %v313
        %v667 = vunpack.c.h.b16 %v313
        %v668 = vunpack.c.l.b16 %v314
        %v669 = vunpack.c.h.b16 %v314
        %v670 = vunpack.c.l.b16 %v315
        %v671 = vunpack.c.h.b16 %v315
        %v672 = vunpack.c.l.b16 %v316
        %v673 = vunpack.c.h.b16 %v316
        %v674 = vunpack.c.l.b16 %v317
        %v675 = vunpack.c.h.b16 %v317
        %v676 = vunpack.c.l.b16 %v318
        %v677 = vunpack.c.h.b16 %v318
        %v678 = vunpack.c.l.b16 %v319
        %v679 = vunpack.c.h.b16 %v319
        %v680 = vunpack.c.l.b16 %v320
        %v681 = vunpack.c.h.b16 %v320
        %v682 = vunpack.c.l.b16 %v321
        %v683 = vunpack.c.h.b16 %v321
        %v684 = vunpack.c.l.b16 %v322
        %v685 = vunpack.c.h.b16 %v322
        %v686 = vunpack.c.l.b16 %v323
        %v687 = vunpack.c.h.b16 %v323
        %v688 = vunpack.c.l.b16 %v324
        %v689 = vunpack.c.h.b16 %v324
        %v690 = vunpack.c.l.b16 %v325
        %v691 = vunpack.c.h.b16 %v325
        %v692 = vunpack.c.l.b16 %v326
        %v693 = vunpack.c.h.b16 %v326
        %v694 = vunpack.c.l.b16 %v327
        %v695 = vunpack.c.h.b16 %v327
        %v696 = vunpack.c.l.b16 %v328
        %v697 = vunpack.c.h.b16 %v328
        %v698 = vunpack.c.l.b16 %v329
        %v699 = vunpack.c.h.b16 %v329
        %v700 = vunpack.c.l.b16 %v330
        %v701 = vunpack.c.h.b16 %v330
        %v702 = vunpack.c.l.b16 %v331
        %v703 = vunpack.c.h.b16 %v331
        %v704 = vunpack.c.l.b16 %v332
        %v705 = vunpack.c.h.b16 %v332
        %v706 = vunpack.c.l.b16 %v333
        %v707 = vunpack.c.h.b16 %v333
        %v708 = vunpack.c.l.b16 %v334
        %v709 = vunpack.c.h.b16 %v334
        %v710 = vunpack.c.l.b16 %v335
        %v711 = vunpack.c.h.b16 %v335
        %v712 = vunpack.c.l.b16 %v336
        %v713 = vunpack.c.h.b16 %v336
        %v714 = vunpack.c.l.b16 %v337
        %v715 = vunpack.c.h.b16 %v337
        %v716 = vunpack.c.l.b16 %v338
        %v717 = vunpack.c.h.b16 %v338
        %v718 = vunpack.c.l.b16 %v339
        %v719 = vunpack.c.h.b16 %v339
        %v720 = vunpack.c.l.b16 %v340
        %v721 = vunpack.c.h.b16 %v340
        %v722 = vunpack.c.l.b16 %v341
        %v723 = vunpack.c.h.b16 %v341
        %v724 = vunpack.c.l.b16 %v342
        %v725 = vunpack.c.h.b16 %v342
        %v726 = vunpack.c.l.b16 %v343
        %v727 = vunpack.c.h.b16 %v343
        %v728 = vunpack.c.l.b16 %v344
        %v729 = vunpack.c.h.b16 %v344
        %v730 = vunpack.c.l.b16 %v345
        %v731 = vunpack.c.h.b16 %v345
        %v732 = vunpack.c.l.b16 %v346
        %v733 = vunpack.c.h.b16 %v346
        %v734 = vunpack.c.l.b16 %v347
        %v735 = vunpack.c.h.b16 %v347
        %v736 = vunpack.c.l.b16 %v348
        %v737 = vunpack.c.h.b16 %v348
        %v738 = vunpack.c.l.b16 %v349
        %v739 = vunpack.c.h.b16 %v349
        %v740 = vunpack.c.l.b16 %v350
        %v741 = vunpack.c.h.b16 %v350
        %v742 = vunpack.c.l.b16 %v351
        %v743 = vunpack.c.h.b16 %v351
        %v744 = vunpack.c.l.b16 %v352
        %v745 = vunpack.c.h.b16 %v352
        %v746 = vunpack.c.l.b16 %v353
        %v747 = vunpack.c.h.b16 %v353
        %v748 = vunpack.c.l.b16 %v354
        %v749 = vunpack.c.h.b16 %v354
        %v750 = vunpack.c.l.b16 %v355
        %v751 = vunpack.c.h.b16 %v355
        %v752 = vunpack.c.l.b16 %v356
        %v753 = vunpack.c.h.b16 %v356
        %v754 = vunpack.c.l.b16 %v357
        %v755 = vunpack.c.h.b16 %v357
        %v756 = vunpack.c.l.b16 %v358
        %v757 = vunpack.c.h.b16 %v358
        %v758 = vunpack.c.l.b16 %v359
        %v759 = vunpack.c.h.b16 %v359
        %v760 = vunpack.c.l.b16 %v360
        %v761 = vunpack.c.h.b16 %v360
        %v762 = vunpack.c.l.b16 %v361
        %v763 = vunpack.c.h.b16 %v361
        %v764 = vunpack.c.l.b16 %v362
        %v765 = vunpack.c.h.b16 %v362
        %v766 = vunpack.c.l.b16 %v363
        %v767 = vunpack.c.h.b16 %v363
        %v768 = vunpack.c.l.b16 %v364
        %v769 = vunpack.c.h.b16 %v364
        %v770 = vunpack.c.l.b16 %v365
        %v771 = vunpack.c.h.b16 %v365
        %v772 = vunpack.c.l.b16 %v366
        %v773 = vunpack.c.h.b16 %v366
        %v774 = vunpack.c.l.b16 %v367
        %v775 = vunpack.c.h.b16 %v367
        %v776 = vunpack.c.l.b16 %v368
        %v777 = vunpack.c.h.b16 %v368
        %v778 = vunpack.c.l.b16 %v369
        %v779 = vunpack.c.h.b16 %v369
        %v780 = vunpack.c.l.b16 %v370
        %v781 = vunpack.c.h.b16 %v370
        %v782 = vunpack.c.l.b16 %v371
        %v783 = vunpack.c.h.b16 %v371
        %v784 = vunpack.c.l.b16 %v372
        %v785 = vunpack.c.h.b16 %v372
        %v786 = vunpack.c.l.b16 %v373
        %v787 = vunpack.c.h.b16 %v373
        %v788 = vunpack.c.l.b16 %v374
        %v789 = vunpack.c.h.b16 %v374
        %v790 = vunpack.c.l.b16 %v375
        %v791 = vunpack.c.h.b16 %v375
        %v792 = vunpack.c.l.b16 %v376
        %v793 = vunpack.c.h.b16 %v376
        %v794 = vunpack.c.l.b16 %v377
        %v795 = vunpack.c.h.b16 %v377
        %v796 = vunpack.c.l.b16 %v378
        %v797 = vunpack.c.h.b16 %v378
        %v798 = vunpack.c.l.b16 %v379
        %v799 = vunpack.c.h.b16 %v379
        %v800 = vunpack.c.l.b16 %v380
        %v801 = vunpack.c.h.b16 %v380
        %v802 = vunpack.c.l.b16 %v381
        %v803 = vunpack.c.h.b16 %v381
        %v804 = vunpack.c.l.b16 %v382
        %v805 = vunpack.c.h.b16 %v382
        %v806 = vunpack.c.l.b16 %v383
        %v807 = vunpack.c.h.b16 %v383
        %v808 = vunpack.c.l.b16 %v384
        %v809 = vunpack.c.h.b16 %v384
        %v810 = vunpack.c.l.b16 %v385
        %v811 = vunpack.c.h.b16 %v385
        %v812 = vunpack.c.l.b16 %v386
        %v813 = vunpack.c.h.b16 %v386
        %v814 = vunpack.c.l.b16 %v387
        %v815 = vunpack.c.h.b16 %v387
        %v816 = vunpack.c.l.b16 %v388
        %v817 = vunpack.c.h.b16 %v388
        %v818 = vunpack.c.l.b16 %v389
        %v819 = vunpack.c.h.b16 %v389
        %v820 = vunpack.c.l.b16 %v390
        %v821 = vunpack.c.h.b16 %v390
        %v822 = vunpack.c.l.b16 %v391
        %v823 = vunpack.c.h.b16 %v391
        %v824 = vunpack.c.l.b16 %v392
        %v825 = vunpack.c.h.b16 %v392
        %v826 = vunpack.c.l.b16 %v393
        %v827 = vunpack.c.h.b16 %v393
        %v828 = vunpack.c.l.b16 %v394
        %v829 = vunpack.c.h.b16 %v394
        %v830 = vunpack.c.l.b16 %v395
        %v831 = vunpack.c.h.b16 %v395
        %v832 = vunpack.c.l.b16 %v396
        %v833 = vunpack.c.h.b16 %v396
        %v834 = vunpack.c.l.b16 %v397
        %v835 = vunpack.c.h.b16 %v397
        %v836 = vunpack.c.l.b16 %v398
        %v837 = vunpack.c.h.b16 %v398
        %v838 = vunpack.c.l.b16 %v399
        %v839 = vunpack.c.h.b16 %v399
        %v840 = vunpack.c.l.b16 %v400
        %v841 = vunpack.c.h.b16 %v400
        %v842 = vunpack.c.l.b16 %v401
        %v843 = vunpack.c.h.b16 %v401
        %v844 = vunpack.c.l.b16 %v402
        %v845 = vunpack.c.h.b16 %v402
        %v846 = vunpack.c.l.b16 %v403
        %v847 = vunpack.c.h.b16 %v403
        %v848 = vunpack.c.l.b16 %v404
        %v849 = vunpack.c.h.b16 %v404
        %v850 = vunpack.c.l.b16 %v405
        %v851 = vunpack.c.h.b16 %v405
        %v852 = vunpack.c.l.b16 %v406
        %v853 = vunpack.c.h.b16 %v406
        %v854 = vunpack.c.l.b16 %v407
        %v855 = vunpack.c.h.b16 %v407
        %v856 = vpack.c.b16 %v670, %v664
        %v857 = vpack.c.b16 %v671, %v665
        %v858 = vpack.c.b16 %v672, %v666
        %v859 = vpack.c.b16 %v673, %v667
        %v860 = vpack.c.b16 %v674, %v668
        %v861 = vpack.c.b16 %v675, %v669
        %v862 = vpack.c.b16 %v682, %v676
        %v863 = vpack.c.b16 %v683, %v677
        %v864 = vpack.c.b16 %v684, %v678
        %v865 = vpack.c.b16 %v685, %v679
        %v866 = vpack.c.b16 %v686, %v680
        %v867 = vpack.c.b16 %v687, %v681
        %v868 = vpack.c.b16 %v694, %v688
        %v869 = vpack.c.b16 %v695, %v689
        %v870 = vpack.c.b16 %v696, %v690
        %v871 = vpack.c.b16 %v697, %v691
        %v872 = vpack.c.b16 %v698, %v692
        %v873 = vpack.c.b16 %v699, %v693
        %v874 = vpack.c.b16 %v706, %v700
        %v875 = vpack.c.b16 %v707, %v701
        %v876 = vpack.c.b16 %v708, %v702
        %v877 = vpack.c.b16 %v709, %v703
        %v878 = vpack.c.b16 %v710, %v704
        %v879 = vpack.c.b16 %v711, %v705
        %v880 = vpack.c.b16 %v718, %v712
        %v881 = vpack.c.b16 %v719, %v713
        %v882 = vpack.c.b16 %v720, %v714
        %v883 = vpack.c.b16 %v721, %v715
        %v884 = vpack.c.b16 %v722, %v716
        %v885 = vpack.c.b16 %v723, %v717
        %v886 = vpack.c.b16 %v730, %v724
        %v887 = vpack.c.b16 %v731, %v725
        %v888 = vpack.c.b16 %v732, %v726
        %v889 = vpack.c.b16 %v733, %v727
        %v890 = vpack.c.b16 %v734, %v728
        %v891 = vpack.c.b16 %v735, %v729
        %v892 = vpack.c.b16 %v742, %v736
        %v893 = vpack.c.b16 %v743, %v737
        %v894 = vpack.c.b16 %v744, %v738
        %v895 = vpack.c.b16 %v745, %v739
        %v896 = vpack.c.b16 %v746, %v740
        %v897 = vpack.c.b16 %v747, %v741
        %v898 = vpack.c.b16 %v754, %v748
        %v899 = vpack.c.b16 %v755, %v749
        %v900 = vpack.c.b16 %v756, %v750
        %v901 = vpack.c.b16 %v757, %v751
        %v902 = vpack.c.b16 %v758, %v752
        %v903 = vpack.c.b16 %v759, %v753
        %v904 = vpack.c.b16 %v766, %v760
        %v905 = vpack.c.b16 %v767, %v761
        %v906 = vpack.c.b16 %v768, %v762
        %v907 = vpack.c.b16 %v769, %v763
        %v908 = vpack.c.b16 %v770, %v764
        %v909 = vpack.c.b16 %v771, %v765
        %v910 = vpack.c.b16 %v778, %v772
        %v911 = vpack.c.b16 %v779, %v773
        %v912 = vpack.c.b16 %v780, %v774
        %v913 = vpack.c.b16 %v781, %v775
        %v914 = vpack.c.b16 %v782, %v776
        %v915 = vpack.c.b16 %v783, %v777
        %v916 = vpack.c.b16 %v790, %v784
        %v917 = vpack.c.b16 %v791, %v785
        %v918 = vpack.c.b16 %v792, %v786
        %v919 = vpack.c.b16 %v793, %v787
        %v920 = vpack.c.b16 %v794, %v788
        %v921 = vpack.c.b16 %v795, %v789
        %v922 = vpack.c.b16 %v802, %v796
        %v923 = vpack.c.b16 %v803, %v797
        %v924 = vpack.c.b16 %v804, %v798
        %v925 = vpack.c.b16 %v805, %v799
        %v926 = vpack.c.b16 %v806, %v800
        %v927 = vpack.c.b16 %v807, %v801
        %v928 = vpack.c.b16 %v814, %v808
        %v929 = vpack.c.b16 %v815, %v809
        %v930 = vpack.c.b16 %v816, %v810
        %v931 = vpack.c.b16 %v817, %v811
        %v932 = vpack.c.b16 %v818, %v812
        %v933 = vpack.c.b16 %v819, %v813
        %v934 = vpack.c.b16 %v826, %v820
        %v935 = vpack.c.b16 %v827, %v821
        %v936 = vpack.c.b16 %v828, %v822
        %v937 = vpack.c.b16 %v829, %v823
        %v938 = vpack.c.b16 %v830, %v824
        %v939 = vpack.c.b16 %v831, %v825
        %v940 = vpack.c.b16 %v838, %v832
        %v941 = vpack.c.b16 %v839, %v833
        %v942 = vpack.c.b16 %v840, %v834
        %v943 = vpack.c.b16 %v841, %v835
        %v944 = vpack.c.b16 %v842, %v836
        %v945 = vpack.c.b16 %v843, %v837
        %v946 = vpack.c.b16 %v850, %v844
        %v947 = vpack.c.b16 %v851, %v845
        %v948 = vpack.c.b16 %v852, %v846
        %v949 = vpack.c.b16 %v853, %v847
        %v950 = vpack.c.b16 %v854, %v848
        %v951 = vpack.c.b16 %v855, %v849
        %1048 = vmatpush.bf16.msra.mxu0 %v898
        %1049 = vmatpush.bf16.msra.mxu0 %v892
        %1050 = vmatpush.bf16.msra.mxu0 %v886
        %1051 = vmatpush.bf16.msra.mxu0 %v880
        %1052 = vmatpush.bf16.msra.mxu0 %v874
        %1053 = vmatpush.bf16.msra.mxu0 %v868
        %1054 = vmatpush.bf16.msra.mxu0 %v862
        %1055 = vmatpush.bf16.msra.mxu0 %v856
        %1056 = vmatmul.bf16.gmra.mxu0 %v504
        %v1057 = vpop.f32.mrf.mxu0
        %v1058 = vadd.f32 0.0, %v1057
        %v1059 = vpop.f32.mrf.mxu0
        %v1060 = vadd.f32 0.0, %v1059
        %1061 = vmatmul.bf16.gmra.mxu0 %v506
        %v1062 = vpop.f32.mrf.mxu0
        %v1063 = vadd.f32 0.0, %v1062
        %v1064 = vpop.f32.mrf.mxu0
        %v1065 = vadd.f32 0.0, %v1064
        %1066 = vmatmul.bf16.gmra.mxu0 %v508
        %v1067 = vpop.f32.mrf.mxu0
        %v1068 = vadd.f32 0.0, %v1067
        %v1069 = vpop.f32.mrf.mxu0
        %v1070 = vadd.f32 0.0, %v1069
        %1071 = vmatmul.bf16.gmra.mxu0 %v510
        %v1072 = vpop.f32.mrf.mxu0
        %v1073 = vadd.f32 0.0, %v1072
        %v1074 = vpop.f32.mrf.mxu0
        %v1075 = vadd.f32 0.0, %v1074
        %1076 = vmatmul.bf16.gmra.mxu0 %v512
        %v1077 = vpop.f32.mrf.mxu0
        %v1078 = vadd.f32 0.0, %v1077
        %v1079 = vpop.f32.mrf.mxu0
        %v1080 = vadd.f32 0.0, %v1079
        %1081 = vmatmul.bf16.gmra.mxu0 %v514
        %v1082 = vpop.f32.mrf.mxu0
        %v1083 = vadd.f32 0.0, %v1082
        %v1084 = vpop.f32.mrf.mxu0
        %v1085 = vadd.f32 0.0, %v1084
        %1086 = vmatmul.bf16.gmra.mxu0 %v516
        %v1087 = vpop.f32.mrf.mxu0
        %v1088 = vadd.f32 0.0, %v1087
        %v1089 = vpop.f32.mrf.mxu0
        %v1090 = vadd.f32 0.0, %v1089
        %1091 = vmatmul.bf16.gmra.mxu0 %v518
        %v1092 = vpop.f32.mrf.mxu0
        %v1093 = vadd.f32 0.0, %v1092
        %v1094 = vpop.f32.mrf.mxu0
        %v1095 = vadd.f32 0.0, %v1094
        %1096 = vmatmul.bf16.gmra.mxu0 %v520
        %v1097 = vpop.f32.mrf.mxu0
        %v1098 = vadd.f32 0.0, %v1097
        %v1099 = vpop.f32.mrf.mxu0
        %v1100 = vadd.f32 0.0, %v1099
        %1101 = vmatmul.bf16.gmra.mxu0 %v522
        %v1102 = vpop.f32.mrf.mxu0
        %v1103 = vadd.f32 0.0, %v1102
        %v1104 = vpop.f32.mrf.mxu0
        %v1105 = vadd.f32 0.0, %v1104
        %1106 = vmatmul.bf16.gmra.mxu0 %v524
        %v1107 = vpop.f32.mrf.mxu0
        %v1108 = vadd.f32 0.0, %v1107
        %v1109 = vpop.f32.mrf.mxu0
        %v1110 = vadd.f32 0.0, %v1109
        %1111 = vmatmul.bf16.gmra.mxu0 %v526
        %v1112 = vpop.f32.mrf.mxu0
        %v1113 = vadd.f32 0.0, %v1112
        %v1114 = vpop.f32.mrf.mxu0
        %v1115 = vadd.f32 0.0, %v1114
        %1116 = vmatmul.bf16.gmra.mxu0 %v528
        %v1117 = vpop.f32.mrf.mxu0
        %v1118 = vadd.f32 0.0, %v1117
        %v1119 = vpop.f32.mrf.mxu0
        %v1120 = vadd.f32 0.0, %v1119
        %1121 = vmatmul.bf16.gmra.mxu0 %v530
        %v1122 = vpop.f32.mrf.mxu0
        %v1123 = vadd.f32 0.0, %v1122
        %v1124 = vpop.f32.mrf.mxu0
        %v1125 = vadd.f32 0.0, %v1124
        %1126 = vmatmul.bf16.gmra.mxu0 %v532
        %v1127 = vpop.f32.mrf.mxu0
        %v1128 = vadd.f32 0.0, %v1127
        %v1129 = vpop.f32.mrf.mxu0
        %v1130 = vadd.f32 0.0, %v1129
        %1131 = vmatmul.bf16.gmra.mxu0 %v534
        %v1132 = vpop.f32.mrf.mxu0
        %v1133 = vadd.f32 0.0, %v1132
        %v1134 = vpop.f32.mrf.mxu0
        %v1135 = vadd.f32 0.0, %v1134
        %1136 = vdwg.mxu0
        %1137 = vmatpush.bf16.msra.mxu0 %v946
        %1138 = vmatpush.bf16.msra.mxu0 %v940
        %1139 = vmatpush.bf16.msra.mxu0 %v934
        %1140 = vmatpush.bf16.msra.mxu0 %v928
        %1141 = vmatpush.bf16.msra.mxu0 %v922
        %1142 = vmatpush.bf16.msra.mxu0 %v916
        %1143 = vmatpush.bf16.msra.mxu0 %v910
        %1144 = vmatpush.bf16.msra.mxu0 %v904
        %1145 = vmatmul.bf16.gmra.mxu0 %v505
        %v1146 = vpop.f32.mrf.mxu0
        %v1147 = vadd.f32 %v1058, %v1146
        %v1148 = vpop.f32.mrf.mxu0
        %v1149 = vadd.f32 %v1060, %v1148
        %1150 = vmatmul.bf16.gmra.mxu0 %v507
        %v1151 = vpop.f32.mrf.mxu0
        %v1152 = vadd.f32 %v1063, %v1151
        %v1153 = vpop.f32.mrf.mxu0
        %v1154 = vadd.f32 %v1065, %v1153
        %1155 = vmatmul.bf16.gmra.mxu0 %v509
        %v1156 = vpop.f32.mrf.mxu0
        %v1157 = vadd.f32 %v1068, %v1156
        %v1158 = vpop.f32.mrf.mxu0
        %v1159 = vadd.f32 %v1070, %v1158
        %1160 = vmatmul.bf16.gmra.mxu0 %v511
        %v1161 = vpop.f32.mrf.mxu0
        %v1162 = vadd.f32 %v1073, %v1161
        %v1163 = vpop.f32.mrf.mxu0
        %v1164 = vadd.f32 %v1075, %v1163
        %1165 = vmatmul.bf16.gmra.mxu0 %v513
        %v1166 = vpop.f32.mrf.mxu0
        %v1167 = vadd.f32 %v1078, %v1166
        %v1168 = vpop.f32.mrf.mxu0
        %v1169 = vadd.f32 %v1080, %v1168
        %1170 = vmatmul.bf16.gmra.mxu0 %v515
        %v1171 = vpop.f32.mrf.mxu0
        %v1172 = vadd.f32 %v1083, %v1171
        %v1173 = vpop.f32.mrf.mxu0
        %v1174 = vadd.f32 %v1085, %v1173
        %1175 = vmatmul.bf16.gmra.mxu0 %v517
        %v1176 = vpop.f32.mrf.mxu0
        %v1177 = vadd.f32 %v1088, %v1176
        %v1178 = vpop.f32.mrf.mxu0
        %v1179 = vadd.f32 %v1090, %v1178
        %1180 = vmatmul.bf16.gmra.mxu0 %v519
        %v1181 = vpop.f32.mrf.mxu0
        %v1182 = vadd.f32 %v1093, %v1181
        %v1183 = vpop.f32.mrf.mxu0
        %v1184 = vadd.f32 %v1095, %v1183
        %1185 = vmatmul.bf16.gmra.mxu0 %v521
        %v1186 = vpop.f32.mrf.mxu0
        %v1187 = vadd.f32 %v1098, %v1186
        %v1188 = vpop.f32.mrf.mxu0
        %v1189 = vadd.f32 %v1100, %v1188
        %1190 = vmatmul.bf16.gmra.mxu0 %v523
        %v1191 = vpop.f32.mrf.mxu0
        %v1192 = vadd.f32 %v1103, %v1191
        %v1193 = vpop.f32.mrf.mxu0
        %v1194 = vadd.f32 %v1105, %v1193
        %1195 = vmatmul.bf16.gmra.mxu0 %v525
        %v1196 = vpop.f32.mrf.mxu0
        %v1197 = vadd.f32 %v1108, %v1196
        %v1198 = vpop.f32.mrf.mxu0
        %v1199 = vadd.f32 %v1110, %v1198
        %1200 = vmatmul.bf16.gmra.mxu0 %v527
        %v1201 = vpop.f32.mrf.mxu0
        %v1202 = vadd.f32 %v1113, %v1201
        %v1203 = vpop.f32.mrf.mxu0
        %v1204 = vadd.f32 %v1115, %v1203
        %1205 = vmatmul.bf16.gmra.mxu0 %v529
        %v1206 = vpop.f32.mrf.mxu0
        %v1207 = vadd.f32 %v1118, %v1206
        %v1208 = vpop.f32.mrf.mxu0
        %v1209 = vadd.f32 %v1120, %v1208
        %1210 = vmatmul.bf16.gmra.mxu0 %v531
        %v1211 = vpop.f32.mrf.mxu0
        %v1212 = vadd.f32 %v1123, %v1211
        %v1213 = vpop.f32.mrf.mxu0
        %v1214 = vadd.f32 %v1125, %v1213
        %1215 = vmatmul.bf16.gmra.mxu0 %v533
        %v1216 = vpop.f32.mrf.mxu0
        %v1217 = vadd.f32 %v1128, %v1216
        %v1218 = vpop.f32.mrf.mxu0
        %v1219 = vadd.f32 %v1130, %v1218
        %1220 = vmatmul.bf16.gmra.mxu0 %v535
        %v1221 = vpop.f32.mrf.mxu0
        %v1222 = vadd.f32 %v1133, %v1221
        %v1223 = vpop.f32.mrf.mxu0
        %v1224 = vadd.f32 %v1135, %v1223
        %1225 = vdwg.mxu0
        %1226 = vmatpush.bf16.msra.mxu0 %v899
        %1227 = vmatpush.bf16.msra.mxu0 %v893
        %1228 = vmatpush.bf16.msra.mxu0 %v887
        %1229 = vmatpush.bf16.msra.mxu0 %v881
        %1230 = vmatpush.bf16.msra.mxu0 %v875
        %1231 = vmatpush.bf16.msra.mxu0 %v869
        %1232 = vmatpush.bf16.msra.mxu0 %v863
        %1233 = vmatpush.bf16.msra.mxu0 %v857
        %1234 = vmatmul.bf16.gmra.mxu0 %v504
        %v1235 = vpop.f32.mrf.mxu0
        %v1236 = vadd.f32 0.0, %v1235
        %v1237 = vpop.f32.mrf.mxu0
        %v1238 = vadd.f32 0.0, %v1237
        %1239 = vmatmul.bf16.gmra.mxu0 %v506
        %v1240 = vpop.f32.mrf.mxu0
        %v1241 = vadd.f32 0.0, %v1240
        %v1242 = vpop.f32.mrf.mxu0
        %v1243 = vadd.f32 0.0, %v1242
        %1244 = vmatmul.bf16.gmra.mxu0 %v508
        %v1245 = vpop.f32.mrf.mxu0
        %v1246 = vadd.f32 0.0, %v1245
        %v1247 = vpop.f32.mrf.mxu0
        %v1248 = vadd.f32 0.0, %v1247
        %1249 = vmatmul.bf16.gmra.mxu0 %v510
        %v1250 = vpop.f32.mrf.mxu0
        %v1251 = vadd.f32 0.0, %v1250
        %v1252 = vpop.f32.mrf.mxu0
        %v1253 = vadd.f32 0.0, %v1252
        %1254 = vmatmul.bf16.gmra.mxu0 %v512
        %v1255 = vpop.f32.mrf.mxu0
        %v1256 = vadd.f32 0.0, %v1255
        %v1257 = vpop.f32.mrf.mxu0
        %v1258 = vadd.f32 0.0, %v1257
        %1259 = vmatmul.bf16.gmra.mxu0 %v514
        %v1260 = vpop.f32.mrf.mxu0
        %v1261 = vadd.f32 0.0, %v1260
        %v1262 = vpop.f32.mrf.mxu0
        %v1263 = vadd.f32 0.0, %v1262
        %1264 = vmatmul.bf16.gmra.mxu0 %v516
        %v1265 = vpop.f32.mrf.mxu0
        %v1266 = vadd.f32 0.0, %v1265
        %v1267 = vpop.f32.mrf.mxu0
        %v1268 = vadd.f32 0.0, %v1267
        %1269 = vmatmul.bf16.gmra.mxu0 %v518
        %v1270 = vpop.f32.mrf.mxu0
        %v1271 = vadd.f32 0.0, %v1270
        %v1272 = vpop.f32.mrf.mxu0
        %v1273 = vadd.f32 0.0, %v1272
        %1274 = vmatmul.bf16.gmra.mxu0 %v520
        %v1275 = vpop.f32.mrf.mxu0
        %v1276 = vadd.f32 0.0, %v1275
        %v1277 = vpop.f32.mrf.mxu0
        %v1278 = vadd.f32 0.0, %v1277
        %1279 = vmatmul.bf16.gmra.mxu0 %v522
        %v1280 = vpop.f32.mrf.mxu0
        %v1281 = vadd.f32 0.0, %v1280
        %v1282 = vpop.f32.mrf.mxu0
        %v1283 = vadd.f32 0.0, %v1282
        %1284 = vmatmul.bf16.gmra.mxu0 %v524
        %v1285 = vpop.f32.mrf.mxu0
        %v1286 = vadd.f32 0.0, %v1285
        %v1287 = vpop.f32.mrf.mxu0
        %v1288 = vadd.f32 0.0, %v1287
        %1289 = vmatmul.bf16.gmra.mxu0 %v526
        %v1290 = vpop.f32.mrf.mxu0
        %v1291 = vadd.f32 0.0, %v1290
        %v1292 = vpop.f32.mrf.mxu0
        %v1293 = vadd.f32 0.0, %v1292
        %1294 = vmatmul.bf16.gmra.mxu0 %v528
        %v1295 = vpop.f32.mrf.mxu0
        %v1296 = vadd.f32 0.0, %v1295
        %v1297 = vpop.f32.mrf.mxu0
        %v1298 = vadd.f32 0.0, %v1297
        %1299 = vmatmul.bf16.gmra.mxu0 %v530
        %v1300 = vpop.f32.mrf.mxu0
        %v1301 = vadd.f32 0.0, %v1300
        %v1302 = vpop.f32.mrf.mxu0
        %v1303 = vadd.f32 0.0, %v1302
        %1304 = vmatmul.bf16.gmra.mxu0 %v532
        %v1305 = vpop.f32.mrf.mxu0
        %v1306 = vadd.f32 0.0, %v1305
        %v1307 = vpop.f32.mrf.mxu0
        %v1308 = vadd.f32 0.0, %v1307
        %1309 = vmatmul.bf16.gmra.mxu0 %v534
        %v1310 = vpop.f32.mrf.mxu0
        %v1311 = vadd.f32 0.0, %v1310
        %v1312 = vpop.f32.mrf.mxu0
        %v1313 = vadd.f32 0.0, %v1312
        %1314 = vdwg.mxu0
        %1315 = vmatpush.bf16.msra.mxu0 %v947
        %1316 = vmatpush.bf16.msra.mxu0 %v941
        %1317 = vmatpush.bf16.msra.mxu0 %v935
        %1318 = vmatpush.bf16.msra.mxu0 %v929
        %1319 = vmatpush.bf16.msra.mxu0 %v923
        %1320 = vmatpush.bf16.msra.mxu0 %v917
        %1321 = vmatpush.bf16.msra.mxu0 %v911
        %1322 = vmatpush.bf16.msra.mxu0 %v905
        %1323 = vmatmul.bf16.gmra.mxu0 %v505
        %v1324 = vpop.f32.mrf.mxu0
        %v1325 = vadd.f32 %v1236, %v1324
        %v1326 = vpop.f32.mrf.mxu0
        %v1327 = vadd.f32 %v1238, %v1326
        %1328 = vmatmul.bf16.gmra.mxu0 %v507
        %v1329 = vpop.f32.mrf.mxu0
        %v1330 = vadd.f32 %v1241, %v1329
        %v1331 = vpop.f32.mrf.mxu0
        %v1332 = vadd.f32 %v1243, %v1331
        %1333 = vmatmul.bf16.gmra.mxu0 %v509
        %v1334 = vpop.f32.mrf.mxu0
        %v1335 = vadd.f32 %v1246, %v1334
        %v1336 = vpop.f32.mrf.mxu0
        %v1337 = vadd.f32 %v1248, %v1336
        %1338 = vmatmul.bf16.gmra.mxu0 %v511
        %v1339 = vpop.f32.mrf.mxu0
        %v1340 = vadd.f32 %v1251, %v1339
        %v1341 = vpop.f32.mrf.mxu0
        %v1342 = vadd.f32 %v1253, %v1341
        %1343 = vmatmul.bf16.gmra.mxu0 %v513
        %v1344 = vpop.f32.mrf.mxu0
        %v1345 = vadd.f32 %v1256, %v1344
        %v1346 = vpop.f32.mrf.mxu0
        %v1347 = vadd.f32 %v1258, %v1346
        %1348 = vmatmul.bf16.gmra.mxu0 %v515
        %v1349 = vpop.f32.mrf.mxu0
        %v1350 = vadd.f32 %v1261, %v1349
        %v1351 = vpop.f32.mrf.mxu0
        %v1352 = vadd.f32 %v1263, %v1351
        %1353 = vmatmul.bf16.gmra.mxu0 %v517
        %v1354 = vpop.f32.mrf.mxu0
        %v1355 = vadd.f32 %v1266, %v1354
        %v1356 = vpop.f32.mrf.mxu0
        %v1357 = vadd.f32 %v1268, %v1356
        %1358 = vmatmul.bf16.gmra.mxu0 %v519
        %v1359 = vpop.f32.mrf.mxu0
        %v1360 = vadd.f32 %v1271, %v1359
        %v1361 = vpop.f32.mrf.mxu0
        %v1362 = vadd.f32 %v1273, %v1361
        %1363 = vmatmul.bf16.gmra.mxu0 %v521
        %v1364 = vpop.f32.mrf.mxu0
        %v1365 = vadd.f32 %v1276, %v1364
        %v1366 = vpop.f32.mrf.mxu0
        %v1367 = vadd.f32 %v1278, %v1366
        %1368 = vmatmul.bf16.gmra.mxu0 %v523
        %v1369 = vpop.f32.mrf.mxu0
        %v1370 = vadd.f32 %v1281, %v1369
        %v1371 = vpop.f32.mrf.mxu0
        %v1372 = vadd.f32 %v1283, %v1371
        %1373 = vmatmul.bf16.gmra.mxu0 %v525
        %v1374 = vpop.f32.mrf.mxu0
        %v1375 = vadd.f32 %v1286, %v1374
        %v1376 = vpop.f32.mrf.mxu0
        %v1377 = vadd.f32 %v1288, %v1376
        %1378 = vmatmul.bf16.gmra.mxu0 %v527
        %v1379 = vpop.f32.mrf.mxu0
        %v1380 = vadd.f32 %v1291, %v1379
        %v1381 = vpop.f32.mrf.mxu0
        %v1382 = vadd.f32 %v1293, %v1381
        %1383 = vmatmul.bf16.gmra.mxu0 %v529
        %v1384 = vpop.f32.mrf.mxu0
        %v1385 = vadd.f32 %v1296, %v1384
        %v1386 = vpop.f32.mrf.mxu0
        %v1387 = vadd.f32 %v1298, %v1386
        %1388 = vmatmul.bf16.gmra.mxu0 %v531
        %v1389 = vpop.f32.mrf.mxu0
        %v1390 = vadd.f32 %v1301, %v1389
        %v1391 = vpop.f32.mrf.mxu0
        %v1392 = vadd.f32 %v1303, %v1391
        %1393 = vmatmul.bf16.gmra.mxu0 %v533
        %v1394 = vpop.f32.mrf.mxu0
        %v1395 = vadd.f32 %v1306, %v1394
        %v1396 = vpop.f32.mrf.mxu0
        %v1397 = vadd.f32 %v1308, %v1396
        %1398 = vmatmul.bf16.gmra.mxu0 %v535
        %v1399 = vpop.f32.mrf.mxu0
        %v1400 = vadd.f32 %v1311, %v1399
        %v1401 = vpop.f32.mrf.mxu0
        %v1402 = vadd.f32 %v1313, %v1401
        %1403 = vdwg.mxu0
        %1404 = vmatpush.bf16.msra.mxu0 %v900
        %1405 = vmatpush.bf16.msra.mxu0 %v894
        %1406 = vmatpush.bf16.msra.mxu0 %v888
        %1407 = vmatpush.bf16.msra.mxu0 %v882
        %1408 = vmatpush.bf16.msra.mxu0 %v876
        %1409 = vmatpush.bf16.msra.mxu0 %v870
        %1410 = vmatpush.bf16.msra.mxu0 %v864
        %1411 = vmatpush.bf16.msra.mxu0 %v858
        %1412 = vmatmul.bf16.gmra.mxu0 %v504
        %v1413 = vpop.f32.mrf.mxu0
        %v1414 = vadd.f32 0.0, %v1413
        %v1415 = vpop.f32.mrf.mxu0
        %v1416 = vadd.f32 0.0, %v1415
        %1417 = vmatmul.bf16.gmra.mxu0 %v506
        %v1418 = vpop.f32.mrf.mxu0
        %v1419 = vadd.f32 0.0, %v1418
        %v1420 = vpop.f32.mrf.mxu0
        %v1421 = vadd.f32 0.0, %v1420
        %1422 = vmatmul.bf16.gmra.mxu0 %v508
        %v1423 = vpop.f32.mrf.mxu0
        %v1424 = vadd.f32 0.0, %v1423
        %v1425 = vpop.f32.mrf.mxu0
        %v1426 = vadd.f32 0.0, %v1425
        %1427 = vmatmul.bf16.gmra.mxu0 %v510
        %v1428 = vpop.f32.mrf.mxu0
        %v1429 = vadd.f32 0.0, %v1428
        %v1430 = vpop.f32.mrf.mxu0
        %v1431 = vadd.f32 0.0, %v1430
        %1432 = vmatmul.bf16.gmra.mxu0 %v512
        %v1433 = vpop.f32.mrf.mxu0
        %v1434 = vadd.f32 0.0, %v1433
        %v1435 = vpop.f32.mrf.mxu0
        %v1436 = vadd.f32 0.0, %v1435
        %1437 = vmatmul.bf16.gmra.mxu0 %v514
        %v1438 = vpop.f32.mrf.mxu0
        %v1439 = vadd.f32 0.0, %v1438
        %v1440 = vpop.f32.mrf.mxu0
        %v1441 = vadd.f32 0.0, %v1440
        %1442 = vmatmul.bf16.gmra.mxu0 %v516
        %v1443 = vpop.f32.mrf.mxu0
        %v1444 = vadd.f32 0.0, %v1443
        %v1445 = vpop.f32.mrf.mxu0
        %v1446 = vadd.f32 0.0, %v1445
        %1447 = vmatmul.bf16.gmra.mxu0 %v518
        %v1448 = vpop.f32.mrf.mxu0
        %v1449 = vadd.f32 0.0, %v1448
        %v1450 = vpop.f32.mrf.mxu0
        %v1451 = vadd.f32 0.0, %v1450
        %1452 = vmatmul.bf16.gmra.mxu0 %v520
        %v1453 = vpop.f32.mrf.mxu0
        %v1454 = vadd.f32 0.0, %v1453
        %v1455 = vpop.f32.mrf.mxu0
        %v1456 = vadd.f32 0.0, %v1455
        %1457 = vmatmul.bf16.gmra.mxu0 %v522
        %v1458 = vpop.f32.mrf.mxu0
        %v1459 = vadd.f32 0.0, %v1458
        %v1460 = vpop.f32.mrf.mxu0
        %v1461 = vadd.f32 0.0, %v1460
        %1462 = vmatmul.bf16.gmra.mxu0 %v524
        %v1463 = vpop.f32.mrf.mxu0
        %v1464 = vadd.f32 0.0, %v1463
        %v1465 = vpop.f32.mrf.mxu0
        %v1466 = vadd.f32 0.0, %v1465
        %1467 = vmatmul.bf16.gmra.mxu0 %v526
        %v1468 = vpop.f32.mrf.mxu0
        %v1469 = vadd.f32 0.0, %v1468
        %v1470 = vpop.f32.mrf.mxu0
        %v1471 = vadd.f32 0.0, %v1470
        %1472 = vmatmul.bf16.gmra.mxu0 %v528
        %v1473 = vpop.f32.mrf.mxu0
        %v1474 = vadd.f32 0.0, %v1473
        %v1475 = vpop.f32.mrf.mxu0
        %v1476 = vadd.f32 0.0, %v1475
        %1477 = vmatmul.bf16.gmra.mxu0 %v530
        %v1478 = vpop.f32.mrf.mxu0
        %v1479 = vadd.f32 0.0, %v1478
        %v1480 = vpop.f32.mrf.mxu0
        %v1481 = vadd.f32 0.0, %v1480
        %1482 = vmatmul.bf16.gmra.mxu0 %v532
        %v1483 = vpop.f32.mrf.mxu0
        %v1484 = vadd.f32 0.0, %v1483
        %v1485 = vpop.f32.mrf.mxu0
        %v1486 = vadd.f32 0.0, %v1485
        %1487 = vmatmul.bf16.gmra.mxu0 %v534
        %v1488 = vpop.f32.mrf.mxu0
        %v1489 = vadd.f32 0.0, %v1488
        %v1490 = vpop.f32.mrf.mxu0
        %v1491 = vadd.f32 0.0, %v1490
        %1492 = vdwg.mxu0
        %1493 = vmatpush.bf16.msra.mxu0 %v948
        %1494 = vmatpush.bf16.msra.mxu0 %v942
        %1495 = vmatpush.bf16.msra.mxu0 %v936
        %1496 = vmatpush.bf16.msra.mxu0 %v930
        %1497 = vmatpush.bf16.msra.mxu0 %v924
        %1498 = vmatpush.bf16.msra.mxu0 %v918
        %1499 = vmatpush.bf16.msra.mxu0 %v912
        %1500 = vmatpush.bf16.msra.mxu0 %v906
        %1501 = vmatmul.bf16.gmra.mxu0 %v505
        %v1502 = vpop.f32.mrf.mxu0
        %v1503 = vadd.f32 %v1414, %v1502
        %v1504 = vpop.f32.mrf.mxu0
        %v1505 = vadd.f32 %v1416, %v1504
        %1506 = vmatmul.bf16.gmra.mxu0 %v507
        %v1507 = vpop.f32.mrf.mxu0
        %v1508 = vadd.f32 %v1419, %v1507
        %v1509 = vpop.f32.mrf.mxu0
        %v1510 = vadd.f32 %v1421, %v1509
        %1511 = vmatmul.bf16.gmra.mxu0 %v509
        %v1512 = vpop.f32.mrf.mxu0
        %v1513 = vadd.f32 %v1424, %v1512
        %v1514 = vpop.f32.mrf.mxu0
        %v1515 = vadd.f32 %v1426, %v1514
        %1516 = vmatmul.bf16.gmra.mxu0 %v511
        %v1517 = vpop.f32.mrf.mxu0
        %v1518 = vadd.f32 %v1429, %v1517
        %v1519 = vpop.f32.mrf.mxu0
        %v1520 = vadd.f32 %v1431, %v1519
        %1521 = vmatmul.bf16.gmra.mxu0 %v513
        %v1522 = vpop.f32.mrf.mxu0
        %v1523 = vadd.f32 %v1434, %v1522
        %v1524 = vpop.f32.mrf.mxu0
        %v1525 = vadd.f32 %v1436, %v1524
        %1526 = vmatmul.bf16.gmra.mxu0 %v515
        %v1527 = vpop.f32.mrf.mxu0
        %v1528 = vadd.f32 %v1439, %v1527
        %v1529 = vpop.f32.mrf.mxu0
        %v1530 = vadd.f32 %v1441, %v1529
        %1531 = vmatmul.bf16.gmra.mxu0 %v517
        %v1532 = vpop.f32.mrf.mxu0
        %v1533 = vadd.f32 %v1444, %v1532
        %v1534 = vpop.f32.mrf.mxu0
        %v1535 = vadd.f32 %v1446, %v1534
        %1536 = vmatmul.bf16.gmra.mxu0 %v519
        %v1537 = vpop.f32.mrf.mxu0
        %v1538 = vadd.f32 %v1449, %v1537
        %v1539 = vpop.f32.mrf.mxu0
        %v1540 = vadd.f32 %v1451, %v1539
        %1541 = vmatmul.bf16.gmra.mxu0 %v521
        %v1542 = vpop.f32.mrf.mxu0
        %v1543 = vadd.f32 %v1454, %v1542
        %v1544 = vpop.f32.mrf.mxu0
        %v1545 = vadd.f32 %v1456, %v1544
        %1546 = vmatmul.bf16.gmra.mxu0 %v523
        %v1547 = vpop.f32.mrf.mxu0
        %v1548 = vadd.f32 %v1459, %v1547
        %v1549 = vpop.f32.mrf.mxu0
        %v1550 = vadd.f32 %v1461, %v1549
        %1551 = vmatmul.bf16.gmra.mxu0 %v525
        %v1552 = vpop.f32.mrf.mxu0
        %v1553 = vadd.f32 %v1464, %v1552
        %v1554 = vpop.f32.mrf.mxu0
        %v1555 = vadd.f32 %v1466, %v1554
        %1556 = vmatmul.bf16.gmra.mxu0 %v527
        %v1557 = vpop.f32.mrf.mxu0
        %v1558 = vadd.f32 %v1469, %v1557
        %v1559 = vpop.f32.mrf.mxu0
        %v1560 = vadd.f32 %v1471, %v1559
        %1561 = vmatmul.bf16.gmra.mxu0 %v529
        %v1562 = vpop.f32.mrf.mxu0
        %v1563 = vadd.f32 %v1474, %v1562
        %v1564 = vpop.f32.mrf.mxu0
        %v1565 = vadd.f32 %v1476, %v1564
        %1566 = vmatmul.bf16.gmra.mxu0 %v531
        %v1567 = vpop.f32.mrf.mxu0
        %v1568 = vadd.f32 %v1479, %v1567
        %v1569 = vpop.f32.mrf.mxu0
        %v1570 = vadd.f32 %v1481, %v1569
        %1571 = vmatmul.bf16.gmra.mxu0 %v533
        %v1572 = vpop.f32.mrf.mxu0
        %v1573 = vadd.f32 %v1484, %v1572
        %v1574 = vpop.f32.mrf.mxu0
        %v1575 = vadd.f32 %v1486, %v1574
        %1576 = vmatmul.bf16.gmra.mxu0 %v535
        %v1577 = vpop.f32.mrf.mxu0
        %v1578 = vadd.f32 %v1489, %v1577
        %v1579 = vpop.f32.mrf.mxu0
        %v1580 = vadd.f32 %v1491, %v1579
        %1581 = vdwg.mxu0
        %1582 = vmatpush.bf16.msra.mxu0 %v901
        %1583 = vmatpush.bf16.msra.mxu0 %v895
        %1584 = vmatpush.bf16.msra.mxu0 %v889
        %1585 = vmatpush.bf16.msra.mxu0 %v883
        %1586 = vmatpush.bf16.msra.mxu0 %v877
        %1587 = vmatpush.bf16.msra.mxu0 %v871
        %1588 = vmatpush.bf16.msra.mxu0 %v865
        %1589 = vmatpush.bf16.msra.mxu0 %v859
        %1590 = vmatmul.bf16.gmra.mxu0 %v504
        %v1591 = vpop.f32.mrf.mxu0
        %v1592 = vadd.f32 0.0, %v1591
        %v1593 = vpop.f32.mrf.mxu0
        %v1594 = vadd.f32 0.0, %v1593
        %1595 = vmatmul.bf16.gmra.mxu0 %v506
        %v1596 = vpop.f32.mrf.mxu0
        %v1597 = vadd.f32 0.0, %v1596
        %v1598 = vpop.f32.mrf.mxu0
        %v1599 = vadd.f32 0.0, %v1598
        %1600 = vmatmul.bf16.gmra.mxu0 %v508
        %v1601 = vpop.f32.mrf.mxu0
        %v1602 = vadd.f32 0.0, %v1601
        %v1603 = vpop.f32.mrf.mxu0
        %v1604 = vadd.f32 0.0, %v1603
        %1605 = vmatmul.bf16.gmra.mxu0 %v510
        %v1606 = vpop.f32.mrf.mxu0
        %v1607 = vadd.f32 0.0, %v1606
        %v1608 = vpop.f32.mrf.mxu0
        %v1609 = vadd.f32 0.0, %v1608
        %1610 = vmatmul.bf16.gmra.mxu0 %v512
        %v1611 = vpop.f32.mrf.mxu0
        %v1612 = vadd.f32 0.0, %v1611
        %v1613 = vpop.f32.mrf.mxu0
        %v1614 = vadd.f32 0.0, %v1613
        %1615 = vmatmul.bf16.gmra.mxu0 %v514
        %v1616 = vpop.f32.mrf.mxu0
        %v1617 = vadd.f32 0.0, %v1616
        %v1618 = vpop.f32.mrf.mxu0
        %v1619 = vadd.f32 0.0, %v1618
        %1620 = vmatmul.bf16.gmra.mxu0 %v516
        %v1621 = vpop.f32.mrf.mxu0
        %v1622 = vadd.f32 0.0, %v1621
        %v1623 = vpop.f32.mrf.mxu0
        %v1624 = vadd.f32 0.0, %v1623
        %1625 = vmatmul.bf16.gmra.mxu0 %v518
        %v1626 = vpop.f32.mrf.mxu0
        %v1627 = vadd.f32 0.0, %v1626
        %v1628 = vpop.f32.mrf.mxu0
        %v1629 = vadd.f32 0.0, %v1628
        %1630 = vmatmul.bf16.gmra.mxu0 %v520
        %v1631 = vpop.f32.mrf.mxu0
        %v1632 = vadd.f32 0.0, %v1631
        %v1633 = vpop.f32.mrf.mxu0
        %v1634 = vadd.f32 0.0, %v1633
        %1635 = vmatmul.bf16.gmra.mxu0 %v522
        %v1636 = vpop.f32.mrf.mxu0
        %v1637 = vadd.f32 0.0, %v1636
        %v1638 = vpop.f32.mrf.mxu0
        %v1639 = vadd.f32 0.0, %v1638
        %1640 = vmatmul.bf16.gmra.mxu0 %v524
        %v1641 = vpop.f32.mrf.mxu0
        %v1642 = vadd.f32 0.0, %v1641
        %v1643 = vpop.f32.mrf.mxu0
        %v1644 = vadd.f32 0.0, %v1643
        %1645 = vmatmul.bf16.gmra.mxu0 %v526
        %v1646 = vpop.f32.mrf.mxu0
        %v1647 = vadd.f32 0.0, %v1646
        %v1648 = vpop.f32.mrf.mxu0
        %v1649 = vadd.f32 0.0, %v1648
        %1650 = vmatmul.bf16.gmra.mxu0 %v528
        %v1651 = vpop.f32.mrf.mxu0
        %v1652 = vadd.f32 0.0, %v1651
        %v1653 = vpop.f32.mrf.mxu0
        %v1654 = vadd.f32 0.0, %v1653
        %1655 = vmatmul.bf16.gmra.mxu0 %v530
        %v1656 = vpop.f32.mrf.mxu0
        %v1657 = vadd.f32 0.0, %v1656
        %v1658 = vpop.f32.mrf.mxu0
        %v1659 = vadd.f32 0.0, %v1658
        %1660 = vmatmul.bf16.gmra.mxu0 %v532
        %v1661 = vpop.f32.mrf.mxu0
        %v1662 = vadd.f32 0.0, %v1661
        %v1663 = vpop.f32.mrf.mxu0
        %v1664 = vadd.f32 0.0, %v1663
        %1665 = vmatmul.bf16.gmra.mxu0 %v534
        %v1666 = vpop.f32.mrf.mxu0
        %v1667 = vadd.f32 0.0, %v1666
        %v1668 = vpop.f32.mrf.mxu0
        %v1669 = vadd.f32 0.0, %v1668
        %1670 = vdwg.mxu0
        %1671 = vmatpush.bf16.msra.mxu0 %v949
        %1672 = vmatpush.bf16.msra.mxu0 %v943
        %1673 = vmatpush.bf16.msra.mxu0 %v937
        %1674 = vmatpush.bf16.msra.mxu0 %v931
        %1675 = vmatpush.bf16.msra.mxu0 %v925
        %1676 = vmatpush.bf16.msra.mxu0 %v919
        %1677 = vmatpush.bf16.msra.mxu0 %v913
        %1678 = vmatpush.bf16.msra.mxu0 %v907
        %1679 = vmatmul.bf16.gmra.mxu0 %v505
        %v1680 = vpop.f32.mrf.mxu0
        %v1681 = vadd.f32 %v1592, %v1680
        %v1682 = vpop.f32.mrf.mxu0
        %v1683 = vadd.f32 %v1594, %v1682
        %1684 = vmatmul.bf16.gmra.mxu0 %v507
        %v1685 = vpop.f32.mrf.mxu0
        %v1686 = vadd.f32 %v1597, %v1685
        %v1687 = vpop.f32.mrf.mxu0
        %v1688 = vadd.f32 %v1599, %v1687
        %1689 = vmatmul.bf16.gmra.mxu0 %v509
        %v1690 = vpop.f32.mrf.mxu0
        %v1691 = vadd.f32 %v1602, %v1690
        %v1692 = vpop.f32.mrf.mxu0
        %v1693 = vadd.f32 %v1604, %v1692
        %1694 = vmatmul.bf16.gmra.mxu0 %v511
        %v1695 = vpop.f32.mrf.mxu0
        %v1696 = vadd.f32 %v1607, %v1695
        %v1697 = vpop.f32.mrf.mxu0
        %v1698 = vadd.f32 %v1609, %v1697
        %1699 = vmatmul.bf16.gmra.mxu0 %v513
        %v1700 = vpop.f32.mrf.mxu0
        %v1701 = vadd.f32 %v1612, %v1700
        %v1702 = vpop.f32.mrf.mxu0
        %v1703 = vadd.f32 %v1614, %v1702
        %1704 = vmatmul.bf16.gmra.mxu0 %v515
        %v1705 = vpop.f32.mrf.mxu0
        %v1706 = vadd.f32 %v1617, %v1705
        %v1707 = vpop.f32.mrf.mxu0
        %v1708 = vadd.f32 %v1619, %v1707
        %1709 = vmatmul.bf16.gmra.mxu0 %v517
        %v1710 = vpop.f32.mrf.mxu0
        %v1711 = vadd.f32 %v1622, %v1710
        %v1712 = vpop.f32.mrf.mxu0
        %v1713 = vadd.f32 %v1624, %v1712
        %1714 = vmatmul.bf16.gmra.mxu0 %v519
        %v1715 = vpop.f32.mrf.mxu0
        %v1716 = vadd.f32 %v1627, %v1715
        %v1717 = vpop.f32.mrf.mxu0
        %v1718 = vadd.f32 %v1629, %v1717
        %1719 = vmatmul.bf16.gmra.mxu0 %v521
        %v1720 = vpop.f32.mrf.mxu0
        %v1721 = vadd.f32 %v1632, %v1720
        %v1722 = vpop.f32.mrf.mxu0
        %v1723 = vadd.f32 %v1634, %v1722
        %1724 = vmatmul.bf16.gmra.mxu0 %v523
        %v1725 = vpop.f32.mrf.mxu0
        %v1726 = vadd.f32 %v1637, %v1725
        %v1727 = vpop.f32.mrf.mxu0
        %v1728 = vadd.f32 %v1639, %v1727
        %1729 = vmatmul.bf16.gmra.mxu0 %v525
        %v1730 = vpop.f32.mrf.mxu0
        %v1731 = vadd.f32 %v1642, %v1730
        %v1732 = vpop.f32.mrf.mxu0
        %v1733 = vadd.f32 %v1644, %v1732
        %1734 = vmatmul.bf16.gmra.mxu0 %v527
        %v1735 = vpop.f32.mrf.mxu0
        %v1736 = vadd.f32 %v1647, %v1735
        %v1737 = vpop.f32.mrf.mxu0
        %v1738 = vadd.f32 %v1649, %v1737
        %1739 = vmatmul.bf16.gmra.mxu0 %v529
        %v1740 = vpop.f32.mrf.mxu0
        %v1741 = vadd.f32 %v1652, %v1740
        %v1742 = vpop.f32.mrf.mxu0
        %v1743 = vadd.f32 %v1654, %v1742
        %1744 = vmatmul.bf16.gmra.mxu0 %v531
        %v1745 = vpop.f32.mrf.mxu0
        %v1746 = vadd.f32 %v1657, %v1745
        %v1747 = vpop.f32.mrf.mxu0
        %v1748 = vadd.f32 %v1659, %v1747
        %1749 = vmatmul.bf16.gmra.mxu0 %v533
        %v1750 = vpop.f32.mrf.mxu0
        %v1751 = vadd.f32 %v1662, %v1750
        %v1752 = vpop.f32.mrf.mxu0
        %v1753 = vadd.f32 %v1664, %v1752
        %1754 = vmatmul.bf16.gmra.mxu0 %v535
        %v1755 = vpop.f32.mrf.mxu0
        %v1756 = vadd.f32 %v1667, %v1755
        %v1757 = vpop.f32.mrf.mxu0
        %v1758 = vadd.f32 %v1669, %v1757
        %1759 = vdwg.mxu0
        %1760 = vmatpush.bf16.msra.mxu0 %v902
        %1761 = vmatpush.bf16.msra.mxu0 %v896
        %1762 = vmatpush.bf16.msra.mxu0 %v890
        %1763 = vmatpush.bf16.msra.mxu0 %v884
        %1764 = vmatpush.bf16.msra.mxu0 %v878
        %1765 = vmatpush.bf16.msra.mxu0 %v872
        %1766 = vmatpush.bf16.msra.mxu0 %v866
        %1767 = vmatpush.bf16.msra.mxu0 %v860
        %1768 = vmatmul.bf16.gmra.mxu0 %v504
        %v1769 = vpop.f32.mrf.mxu0
        %v1770 = vadd.f32 0.0, %v1769
        %v1771 = vpop.f32.mrf.mxu0
        %v1772 = vadd.f32 0.0, %v1771
        %1773 = vmatmul.bf16.gmra.mxu0 %v506
        %v1774 = vpop.f32.mrf.mxu0
        %v1775 = vadd.f32 0.0, %v1774
        %v1776 = vpop.f32.mrf.mxu0
        %v1777 = vadd.f32 0.0, %v1776
        %1778 = vmatmul.bf16.gmra.mxu0 %v508
        %v1779 = vpop.f32.mrf.mxu0
        %v1780 = vadd.f32 0.0, %v1779
        %v1781 = vpop.f32.mrf.mxu0
        %v1782 = vadd.f32 0.0, %v1781
        %1783 = vmatmul.bf16.gmra.mxu0 %v510
        %v1784 = vpop.f32.mrf.mxu0
        %v1785 = vadd.f32 0.0, %v1784
        %v1786 = vpop.f32.mrf.mxu0
        %v1787 = vadd.f32 0.0, %v1786
        %1788 = vmatmul.bf16.gmra.mxu0 %v512
        %v1789 = vpop.f32.mrf.mxu0
        %v1790 = vadd.f32 0.0, %v1789
        %v1791 = vpop.f32.mrf.mxu0
        %v1792 = vadd.f32 0.0, %v1791
        %1793 = vmatmul.bf16.gmra.mxu0 %v514
        %v1794 = vpop.f32.mrf.mxu0
        %v1795 = vadd.f32 0.0, %v1794
        %v1796 = vpop.f32.mrf.mxu0
        %v1797 = vadd.f32 0.0, %v1796
        %1798 = vmatmul.bf16.gmra.mxu0 %v516
        %v1799 = vpop.f32.mrf.mxu0
        %v1800 = vadd.f32 0.0, %v1799
        %v1801 = vpop.f32.mrf.mxu0
        %v1802 = vadd.f32 0.0, %v1801
        %1803 = vmatmul.bf16.gmra.mxu0 %v518
        %v1804 = vpop.f32.mrf.mxu0
        %v1805 = vadd.f32 0.0, %v1804
        %v1806 = vpop.f32.mrf.mxu0
        %v1807 = vadd.f32 0.0, %v1806
        %1808 = vmatmul.bf16.gmra.mxu0 %v520
        %v1809 = vpop.f32.mrf.mxu0
        %v1810 = vadd.f32 0.0, %v1809
        %v1811 = vpop.f32.mrf.mxu0
        %v1812 = vadd.f32 0.0, %v1811
        %1813 = vmatmul.bf16.gmra.mxu0 %v522
        %v1814 = vpop.f32.mrf.mxu0
        %v1815 = vadd.f32 0.0, %v1814
        %v1816 = vpop.f32.mrf.mxu0
        %v1817 = vadd.f32 0.0, %v1816
        %1818 = vmatmul.bf16.gmra.mxu0 %v524
        %v1819 = vpop.f32.mrf.mxu0
        %v1820 = vadd.f32 0.0, %v1819
        %v1821 = vpop.f32.mrf.mxu0
        %v1822 = vadd.f32 0.0, %v1821
        %1823 = vmatmul.bf16.gmra.mxu0 %v526
        %v1824 = vpop.f32.mrf.mxu0
        %v1825 = vadd.f32 0.0, %v1824
        %v1826 = vpop.f32.mrf.mxu0
        %v1827 = vadd.f32 0.0, %v1826
        %1828 = vmatmul.bf16.gmra.mxu0 %v528
        %v1829 = vpop.f32.mrf.mxu0
        %v1830 = vadd.f32 0.0, %v1829
        %v1831 = vpop.f32.mrf.mxu0
        %v1832 = vadd.f32 0.0, %v1831
        %1833 = vmatmul.bf16.gmra.mxu0 %v530
        %v1834 = vpop.f32.mrf.mxu0
        %v1835 = vadd.f32 0.0, %v1834
        %v1836 = vpop.f32.mrf.mxu0
        %v1837 = vadd.f32 0.0, %v1836
        %1838 = vmatmul.bf16.gmra.mxu0 %v532
        %v1839 = vpop.f32.mrf.mxu0
        %v1840 = vadd.f32 0.0, %v1839
        %v1841 = vpop.f32.mrf.mxu0
        %v1842 = vadd.f32 0.0, %v1841
        %1843 = vmatmul.bf16.gmra.mxu0 %v534
        %v1844 = vpop.f32.mrf.mxu0
        %v1845 = vadd.f32 0.0, %v1844
        %v1846 = vpop.f32.mrf.mxu0
        %v1847 = vadd.f32 0.0, %v1846
        %1848 = vdwg.mxu0
        %1849 = vmatpush.bf16.msra.mxu0 %v950
        %1850 = vmatpush.bf16.msra.mxu0 %v944
        %1851 = vmatpush.bf16.msra.mxu0 %v938
        %1852 = vmatpush.bf16.msra.mxu0 %v932
        %1853 = vmatpush.bf16.msra.mxu0 %v926
        %1854 = vmatpush.bf16.msra.mxu0 %v920
        %1855 = vmatpush.bf16.msra.mxu0 %v914
        %1856 = vmatpush.bf16.msra.mxu0 %v908
        %1857 = vmatmul.bf16.gmra.mxu0 %v505
        %v1858 = vpop.f32.mrf.mxu0
        %v1859 = vadd.f32 %v1770, %v1858
        %v1860 = vpop.f32.mrf.mxu0
        %v1861 = vadd.f32 %v1772, %v1860
        %1862 = vmatmul.bf16.gmra.mxu0 %v507
        %v1863 = vpop.f32.mrf.mxu0
        %v1864 = vadd.f32 %v1775, %v1863
        %v1865 = vpop.f32.mrf.mxu0
        %v1866 = vadd.f32 %v1777, %v1865
        %1867 = vmatmul.bf16.gmra.mxu0 %v509
        %v1868 = vpop.f32.mrf.mxu0
        %v1869 = vadd.f32 %v1780, %v1868
        %v1870 = vpop.f32.mrf.mxu0
        %v1871 = vadd.f32 %v1782, %v1870
        %1872 = vmatmul.bf16.gmra.mxu0 %v511
        %v1873 = vpop.f32.mrf.mxu0
        %v1874 = vadd.f32 %v1785, %v1873
        %v1875 = vpop.f32.mrf.mxu0
        %v1876 = vadd.f32 %v1787, %v1875
        %1877 = vmatmul.bf16.gmra.mxu0 %v513
        %v1878 = vpop.f32.mrf.mxu0
        %v1879 = vadd.f32 %v1790, %v1878
        %v1880 = vpop.f32.mrf.mxu0
        %v1881 = vadd.f32 %v1792, %v1880
        %1882 = vmatmul.bf16.gmra.mxu0 %v515
        %v1883 = vpop.f32.mrf.mxu0
        %v1884 = vadd.f32 %v1795, %v1883
        %v1885 = vpop.f32.mrf.mxu0
        %v1886 = vadd.f32 %v1797, %v1885
        %1887 = vmatmul.bf16.gmra.mxu0 %v517
        %v1888 = vpop.f32.mrf.mxu0
        %v1889 = vadd.f32 %v1800, %v1888
        %v1890 = vpop.f32.mrf.mxu0
        %v1891 = vadd.f32 %v1802, %v1890
        %1892 = vmatmul.bf16.gmra.mxu0 %v519
        %v1893 = vpop.f32.mrf.mxu0
        %v1894 = vadd.f32 %v1805, %v1893
        %v1895 = vpop.f32.mrf.mxu0
        %v1896 = vadd.f32 %v1807, %v1895
        %1897 = vmatmul.bf16.gmra.mxu0 %v521
        %v1898 = vpop.f32.mrf.mxu0
        %v1899 = vadd.f32 %v1810, %v1898
        %v1900 = vpop.f32.mrf.mxu0
        %v1901 = vadd.f32 %v1812, %v1900
        %1902 = vmatmul.bf16.gmra.mxu0 %v523
        %v1903 = vpop.f32.mrf.mxu0
        %v1904 = vadd.f32 %v1815, %v1903
        %v1905 = vpop.f32.mrf.mxu0
        %v1906 = vadd.f32 %v1817, %v1905
        %1907 = vmatmul.bf16.gmra.mxu0 %v525
        %v1908 = vpop.f32.mrf.mxu0
        %v1909 = vadd.f32 %v1820, %v1908
        %v1910 = vpop.f32.mrf.mxu0
        %v1911 = vadd.f32 %v1822, %v1910
        %1912 = vmatmul.bf16.gmra.mxu0 %v527
        %v1913 = vpop.f32.mrf.mxu0
        %v1914 = vadd.f32 %v1825, %v1913
        %v1915 = vpop.f32.mrf.mxu0
        %v1916 = vadd.f32 %v1827, %v1915
        %1917 = vmatmul.bf16.gmra.mxu0 %v529
        %v1918 = vpop.f32.mrf.mxu0
        %v1919 = vadd.f32 %v1830, %v1918
        %v1920 = vpop.f32.mrf.mxu0
        %v1921 = vadd.f32 %v1832, %v1920
        %1922 = vmatmul.bf16.gmra.mxu0 %v531
        %v1923 = vpop.f32.mrf.mxu0
        %v1924 = vadd.f32 %v1835, %v1923
        %v1925 = vpop.f32.mrf.mxu0
        %v1926 = vadd.f32 %v1837, %v1925
        %1927 = vmatmul.bf16.gmra.mxu0 %v533
        %v1928 = vpop.f32.mrf.mxu0
        %v1929 = vadd.f32 %v1840, %v1928
        %v1930 = vpop.f32.mrf.mxu0
        %v1931 = vadd.f32 %v1842, %v1930
        %1932 = vmatmul.bf16.gmra.mxu0 %v535
        %v1933 = vpop.f32.mrf.mxu0
        %v1934 = vadd.f32 %v1845, %v1933
        %v1935 = vpop.f32.mrf.mxu0
        %v1936 = vadd.f32 %v1847, %v1935
        %1937 = vdwg.mxu0
        %1938 = vmatpush.bf16.msra.mxu0 %v903
        %1939 = vmatpush.bf16.msra.mxu0 %v897
        %1940 = vmatpush.bf16.msra.mxu0 %v891
        %1941 = vmatpush.bf16.msra.mxu0 %v885
        %1942 = vmatpush.bf16.msra.mxu0 %v879
        %1943 = vmatpush.bf16.msra.mxu0 %v873
        %1944 = vmatpush.bf16.msra.mxu0 %v867
        %1945 = vmatpush.bf16.msra.mxu0 %v861
        %1946 = vmatmul.bf16.gmra.mxu0 %v504
        %v1947 = vpop.f32.mrf.mxu0
        %v1948 = vadd.f32 0.0, %v1947
        %v1949 = vpop.f32.mrf.mxu0
        %v1950 = vadd.f32 0.0, %v1949
        %1951 = vmatmul.bf16.gmra.mxu0 %v506
        %v1952 = vpop.f32.mrf.mxu0
        %v1953 = vadd.f32 0.0, %v1952
        %v1954 = vpop.f32.mrf.mxu0
        %v1955 = vadd.f32 0.0, %v1954
        %1956 = vmatmul.bf16.gmra.mxu0 %v508
        %v1957 = vpop.f32.mrf.mxu0
        %v1958 = vadd.f32 0.0, %v1957
        %v1959 = vpop.f32.mrf.mxu0
        %v1960 = vadd.f32 0.0, %v1959
        %1961 = vmatmul.bf16.gmra.mxu0 %v510
        %v1962 = vpop.f32.mrf.mxu0
        %v1963 = vadd.f32 0.0, %v1962
        %v1964 = vpop.f32.mrf.mxu0
        %v1965 = vadd.f32 0.0, %v1964
        %1966 = vmatmul.bf16.gmra.mxu0 %v512
        %v1967 = vpop.f32.mrf.mxu0
        %v1968 = vadd.f32 0.0, %v1967
        %v1969 = vpop.f32.mrf.mxu0
        %v1970 = vadd.f32 0.0, %v1969
        %1971 = vmatmul.bf16.gmra.mxu0 %v514
        %v1972 = vpop.f32.mrf.mxu0
        %v1973 = vadd.f32 0.0, %v1972
        %v1974 = vpop.f32.mrf.mxu0
        %v1975 = vadd.f32 0.0, %v1974
        %1976 = vmatmul.bf16.gmra.mxu0 %v516
        %v1977 = vpop.f32.mrf.mxu0
        %v1978 = vadd.f32 0.0, %v1977
        %v1979 = vpop.f32.mrf.mxu0
        %v1980 = vadd.f32 0.0, %v1979
        %1981 = vmatmul.bf16.gmra.mxu0 %v518
        %v1982 = vpop.f32.mrf.mxu0
        %v1983 = vadd.f32 0.0, %v1982
        %v1984 = vpop.f32.mrf.mxu0
        %v1985 = vadd.f32 0.0, %v1984
        %1986 = vmatmul.bf16.gmra.mxu0 %v520
        %v1987 = vpop.f32.mrf.mxu0
        %v1988 = vadd.f32 0.0, %v1987
        %v1989 = vpop.f32.mrf.mxu0
        %v1990 = vadd.f32 0.0, %v1989
        %1991 = vmatmul.bf16.gmra.mxu0 %v522
        %v1992 = vpop.f32.mrf.mxu0
        %v1993 = vadd.f32 0.0, %v1992
        %v1994 = vpop.f32.mrf.mxu0
        %v1995 = vadd.f32 0.0, %v1994
        %1996 = vmatmul.bf16.gmra.mxu0 %v524
        %v1997 = vpop.f32.mrf.mxu0
        %v1998 = vadd.f32 0.0, %v1997
        %v1999 = vpop.f32.mrf.mxu0
        %v2000 = vadd.f32 0.0, %v1999
        %2001 = vmatmul.bf16.gmra.mxu0 %v526
        %v2002 = vpop.f32.mrf.mxu0
        %v2003 = vadd.f32 0.0, %v2002
        %v2004 = vpop.f32.mrf.mxu0
        %v2005 = vadd.f32 0.0, %v2004
        %2006 = vmatmul.bf16.gmra.mxu0 %v528
        %v2007 = vpop.f32.mrf.mxu0
        %v2008 = vadd.f32 0.0, %v2007
        %v2009 = vpop.f32.mrf.mxu0
        %v2010 = vadd.f32 0.0, %v2009
        %2011 = vmatmul.bf16.gmra.mxu0 %v530
        %v2012 = vpop.f32.mrf.mxu0
        %v2013 = vadd.f32 0.0, %v2012
        %v2014 = vpop.f32.mrf.mxu0
        %v2015 = vadd.f32 0.0, %v2014
        %2016 = vmatmul.bf16.gmra.mxu0 %v532
        %v2017 = vpop.f32.mrf.mxu0
        %v2018 = vadd.f32 0.0, %v2017
        %v2019 = vpop.f32.mrf.mxu0
        %v2020 = vadd.f32 0.0, %v2019
        %2021 = vmatmul.bf16.gmra.mxu0 %v534
        %v2022 = vpop.f32.mrf.mxu0
        %v2023 = vadd.f32 0.0, %v2022
        %v2024 = vpop.f32.mrf.mxu0
        %v2025 = vadd.f32 0.0, %v2024
        %2026 = vdwg.mxu0
        %2027 = vmatpush.bf16.msra.mxu0 %v951
        %2028 = vmatpush.bf16.msra.mxu0 %v945
        %2029 = vmatpush.bf16.msra.mxu0 %v939
        %2030 = vmatpush.bf16.msra.mxu0 %v933
        %2031 = vmatpush.bf16.msra.mxu0 %v927
        %2032 = vmatpush.bf16.msra.mxu0 %v921
        %2033 = vmatpush.bf16.msra.mxu0 %v915
        %2034 = vmatpush.bf16.msra.mxu0 %v909
        %2035 = vmatmul.bf16.gmra.mxu0 %v505
        %v2036 = vpop.f32.mrf.mxu0
        %v2037 = vadd.f32 %v1948, %v2036
        %v2038 = vpop.f32.mrf.mxu0
        %v2039 = vadd.f32 %v1950, %v2038
        %2040 = vmatmul.bf16.gmra.mxu0 %v507
        %v2041 = vpop.f32.mrf.mxu0
        %v2042 = vadd.f32 %v1953, %v2041
        %v2043 = vpop.f32.mrf.mxu0
        %v2044 = vadd.f32 %v1955, %v2043
        %2045 = vmatmul.bf16.gmra.mxu0 %v509
        %v2046 = vpop.f32.mrf.mxu0
        %v2047 = vadd.f32 %v1958, %v2046
        %v2048 = vpop.f32.mrf.mxu0
        %v2049 = vadd.f32 %v1960, %v2048
        %2050 = vmatmul.bf16.gmra.mxu0 %v511
        %v2051 = vpop.f32.mrf.mxu0
        %v2052 = vadd.f32 %v1963, %v2051
        %v2053 = vpop.f32.mrf.mxu0
        %v2054 = vadd.f32 %v1965, %v2053
        %2055 = vmatmul.bf16.gmra.mxu0 %v513
        %v2056 = vpop.f32.mrf.mxu0
        %v2057 = vadd.f32 %v1968, %v2056
        %v2058 = vpop.f32.mrf.mxu0
        %v2059 = vadd.f32 %v1970, %v2058
        %2060 = vmatmul.bf16.gmra.mxu0 %v515
        %v2061 = vpop.f32.mrf.mxu0
        %v2062 = vadd.f32 %v1973, %v2061
        %v2063 = vpop.f32.mrf.mxu0
        %v2064 = vadd.f32 %v1975, %v2063
        %2065 = vmatmul.bf16.gmra.mxu0 %v517
        %v2066 = vpop.f32.mrf.mxu0
        %v2067 = vadd.f32 %v1978, %v2066
        %v2068 = vpop.f32.mrf.mxu0
        %v2069 = vadd.f32 %v1980, %v2068
        %2070 = vmatmul.bf16.gmra.mxu0 %v519
        %v2071 = vpop.f32.mrf.mxu0
        %v2072 = vadd.f32 %v1983, %v2071
        %v2073 = vpop.f32.mrf.mxu0
        %v2074 = vadd.f32 %v1985, %v2073
        %2075 = vmatmul.bf16.gmra.mxu0 %v521
        %v2076 = vpop.f32.mrf.mxu0
        %v2077 = vadd.f32 %v1988, %v2076
        %v2078 = vpop.f32.mrf.mxu0
        %v2079 = vadd.f32 %v1990, %v2078
        %2080 = vmatmul.bf16.gmra.mxu0 %v523
        %v2081 = vpop.f32.mrf.mxu0
        %v2082 = vadd.f32 %v1993, %v2081
        %v2083 = vpop.f32.mrf.mxu0
        %v2084 = vadd.f32 %v1995, %v2083
        %2085 = vmatmul.bf16.gmra.mxu0 %v525
        %v2086 = vpop.f32.mrf.mxu0
        %v2087 = vadd.f32 %v1998, %v2086
        %v2088 = vpop.f32.mrf.mxu0
        %v2089 = vadd.f32 %v2000, %v2088
        %2090 = vmatmul.bf16.gmra.mxu0 %v527
        %v2091 = vpop.f32.mrf.mxu0
        %v2092 = vadd.f32 %v2003, %v2091
        %v2093 = vpop.f32.mrf.mxu0
        %v2094 = vadd.f32 %v2005, %v2093
        %2095 = vmatmul.bf16.gmra.mxu0 %v529
        %v2096 = vpop.f32.mrf.mxu0
        %v2097 = vadd.f32 %v2008, %v2096
        %v2098 = vpop.f32.mrf.mxu0
        %v2099 = vadd.f32 %v2010, %v2098
        %2100 = vmatmul.bf16.gmra.mxu0 %v531
        %v2101 = vpop.f32.mrf.mxu0
        %v2102 = vadd.f32 %v2013, %v2101
        %v2103 = vpop.f32.mrf.mxu0
        %v2104 = vadd.f32 %v2015, %v2103
        %2105 = vmatmul.bf16.gmra.mxu0 %v533
        %v2106 = vpop.f32.mrf.mxu0
        %v2107 = vadd.f32 %v2018, %v2106
        %v2108 = vpop.f32.mrf.mxu0
        %v2109 = vadd.f32 %v2020, %v2108
        %2110 = vmatmul.bf16.gmra.mxu0 %v535
        %v2111 = vpop.f32.mrf.mxu0
        %v2112 = vadd.f32 %v2023, %v2111
        %v2113 = vpop.f32.mrf.mxu0
        %v2114 = vadd.f32 %v2025, %v2113
        %2115 = vdwg.mxu0
        %v2116 = vpack.c.bf16 %v1325, %v1147
        %v2117 = vpack.c.bf16 %v1681, %v1503
        %v2118 = vpack.c.bf16 %v2037, %v1859
        %v2119 = vpack.c.bf16 %v1327, %v1149
        %v2120 = vpack.c.bf16 %v1683, %v1505
        %v2121 = vpack.c.bf16 %v2039, %v1861
        %v2122 = vpack.c.bf16 %v1330, %v1152
        %v2123 = vpack.c.bf16 %v1686, %v1508
        %v2124 = vpack.c.bf16 %v2042, %v1864
        %v2125 = vpack.c.bf16 %v1332, %v1154
        %v2126 = vpack.c.bf16 %v1688, %v1510
        %v2127 = vpack.c.bf16 %v2044, %v1866
        %v2128 = vpack.c.bf16 %v1335, %v1157
        %v2129 = vpack.c.bf16 %v1691, %v1513
        %v2130 = vpack.c.bf16 %v2047, %v1869
        %v2131 = vpack.c.bf16 %v1337, %v1159
        %v2132 = vpack.c.bf16 %v1693, %v1515
        %v2133 = vpack.c.bf16 %v2049, %v1871
        %v2134 = vpack.c.bf16 %v1340, %v1162
        %v2135 = vpack.c.bf16 %v1696, %v1518
        %v2136 = vpack.c.bf16 %v2052, %v1874
        %v2137 = vpack.c.bf16 %v1342, %v1164
        %v2138 = vpack.c.bf16 %v1698, %v1520
        %v2139 = vpack.c.bf16 %v2054, %v1876
        %v2140 = vpack.c.bf16 %v1345, %v1167
        %v2141 = vpack.c.bf16 %v1701, %v1523
        %v2142 = vpack.c.bf16 %v2057, %v1879
        %v2143 = vpack.c.bf16 %v1347, %v1169
        %v2144 = vpack.c.bf16 %v1703, %v1525
        %v2145 = vpack.c.bf16 %v2059, %v1881
        %v2146 = vpack.c.bf16 %v1350, %v1172
        %v2147 = vpack.c.bf16 %v1706, %v1528
        %v2148 = vpack.c.bf16 %v2062, %v1884
        %v2149 = vpack.c.bf16 %v1352, %v1174
        %v2150 = vpack.c.bf16 %v1708, %v1530
        %v2151 = vpack.c.bf16 %v2064, %v1886
        %v2152 = vpack.c.bf16 %v1355, %v1177
        %v2153 = vpack.c.bf16 %v1711, %v1533
        %v2154 = vpack.c.bf16 %v2067, %v1889
        %v2155 = vpack.c.bf16 %v1357, %v1179
        %v2156 = vpack.c.bf16 %v1713, %v1535
        %v2157 = vpack.c.bf16 %v2069, %v1891
        %v2158 = vpack.c.bf16 %v1360, %v1182
        %v2159 = vpack.c.bf16 %v1716, %v1538
        %v2160 = vpack.c.bf16 %v2072, %v1894
        %v2161 = vpack.c.bf16 %v1362, %v1184
        %v2162 = vpack.c.bf16 %v1718, %v1540
        %v2163 = vpack.c.bf16 %v2074, %v1896
        %v2164 = vpack.c.bf16 %v1365, %v1187
        %v2165 = vpack.c.bf16 %v1721, %v1543
        %v2166 = vpack.c.bf16 %v2077, %v1899
        %v2167 = vpack.c.bf16 %v1367, %v1189
        %v2168 = vpack.c.bf16 %v1723, %v1545
        %v2169 = vpack.c.bf16 %v2079, %v1901
        %v2170 = vpack.c.bf16 %v1370, %v1192
        %v2171 = vpack.c.bf16 %v1726, %v1548
        %v2172 = vpack.c.bf16 %v2082, %v1904
        %v2173 = vpack.c.bf16 %v1372, %v1194
        %v2174 = vpack.c.bf16 %v1728, %v1550
        %v2175 = vpack.c.bf16 %v2084, %v1906
        %v2176 = vpack.c.bf16 %v1375, %v1197
        %v2177 = vpack.c.bf16 %v1731, %v1553
        %v2178 = vpack.c.bf16 %v2087, %v1909
        %v2179 = vpack.c.bf16 %v1377, %v1199
        %v2180 = vpack.c.bf16 %v1733, %v1555
        %v2181 = vpack.c.bf16 %v2089, %v1911
        %v2182 = vpack.c.bf16 %v1380, %v1202
        %v2183 = vpack.c.bf16 %v1736, %v1558
        %v2184 = vpack.c.bf16 %v2092, %v1914
        %v2185 = vpack.c.bf16 %v1382, %v1204
        %v2186 = vpack.c.bf16 %v1738, %v1560
        %v2187 = vpack.c.bf16 %v2094, %v1916
        %v2188 = vpack.c.bf16 %v1385, %v1207
        %v2189 = vpack.c.bf16 %v1741, %v1563
        %v2190 = vpack.c.bf16 %v2097, %v1919
        %v2191 = vpack.c.bf16 %v1387, %v1209
        %v2192 = vpack.c.bf16 %v1743, %v1565
        %v2193 = vpack.c.bf16 %v2099, %v1921
        %v2194 = vpack.c.bf16 %v1390, %v1212
        %v2195 = vpack.c.bf16 %v1746, %v1568
        %v2196 = vpack.c.bf16 %v2102, %v1924
        %v2197 = vpack.c.bf16 %v1392, %v1214
        %v2198 = vpack.c.bf16 %v1748, %v1570
        %v2199 = vpack.c.bf16 %v2104, %v1926
        %v2200 = vpack.c.bf16 %v1395, %v1217
        %v2201 = vpack.c.bf16 %v1751, %v1573
        %v2202 = vpack.c.bf16 %v2107, %v1929
        %v2203 = vpack.c.bf16 %v1397, %v1219
        %v2204 = vpack.c.bf16 %v1753, %v1575
        %v2205 = vpack.c.bf16 %v2109, %v1931
        %v2206 = vpack.c.bf16 %v1400, %v1222
        %v2207 = vpack.c.bf16 %v1756, %v1578
        %v2208 = vpack.c.bf16 %v2112, %v1934
        %v2209 = vpack.c.bf16 %v1402, %v1224
        %v2210 = vpack.c.bf16 %v1758, %v1580
        %v2211 = vpack.c.bf16 %v2114, %v1936
        %2212 = vst [vmem:[%s261] sm:$0xf] %v2116
        %2213 = vst [vmem:[%s261 + $0x4] sm:$0xf] %v2119
        %2214 = vst [vmem:[%s261 + $0x8] sm:$0xf] %v2122
        %2215 = vst [vmem:[%s261 + $0xc] sm:$0xf] %v2125
        %2216 = vst [vmem:[%s261 + $0x10] sm:$0xf] %v2128
        %2217 = vst [vmem:[%s261 + $0x14] sm:$0xf] %v2131
        %2218 = vst [vmem:[%s261 + $0x18] sm:$0xf] %v2134
        %2219 = vst [vmem:[%s261 + $0x1c] sm:$0xf] %v2137
        %2220 = vst [vmem:[%s261 + $0x20] sm:$0xf] %v2140
        %2221 = vst [vmem:[%s261 + $0x24] sm:$0xf] %v2143
        %2222 = vst [vmem:[%s261 + $0x28] sm:$0xf] %v2146
        %2223 = vst [vmem:[%s261 + $0x2c] sm:$0xf] %v2149
        %2224 = vst [vmem:[%s261 + $0x30] sm:$0xf] %v2152
        %2225 = vst [vmem:[%s261 + $0x34] sm:$0xf] %v2155
        %2226 = vst [vmem:[%s261 + $0x38] sm:$0xf] %v2158
        %2227 = vst [vmem:[%s261 + $0x3c] sm:$0xf] %v2161
        %2228 = vst [vmem:[%s261 + $0x40] sm:$0xf] %v2164
        %2229 = vst [vmem:[%s261 + $0x44] sm:$0xf] %v2167
        %2230 = vst [vmem:[%s261 + $0x48] sm:$0xf] %v2170
        %2231 = vst [vmem:[%s261 + $0x4c] sm:$0xf] %v2173
        %2232 = vst [vmem:[%s261 + $0x50] sm:$0xf] %v2176
        %2233 = vst [vmem:[%s261 + $0x54] sm:$0xf] %v2179
        %2234 = vst [vmem:[%s261 + $0x58] sm:$0xf] %v2182
        %2235 = vst [vmem:[%s261 + $0x5c] sm:$0xf] %v2185
        %2236 = vst [vmem:[%s261 + $0x60] sm:$0xf] %v2188
        %2237 = vst [vmem:[%s261 + $0x64] sm:$0xf] %v2191
        %2238 = vst [vmem:[%s261 + $0x68] sm:$0xf] %v2194
        %2239 = vst [vmem:[%s261 + $0x6c] sm:$0xf] %v2197
        %2240 = vst [vmem:[%s261 + $0x70] sm:$0xf] %v2200
        %2241 = vst [vmem:[%s261 + $0x74] sm:$0xf] %v2203
        %2242 = vst [vmem:[%s261 + $0x78] sm:$0xf] %v2206
        %2243 = vst [vmem:[%s261 + $0x7c] sm:$0xf] %v2209
        %2244 = vst [vmem:[%s268] sm:$0xf] %v2117
        %2245 = vst [vmem:[%s268 + $0x4] sm:$0xf] %v2120
        %2246 = vst [vmem:[%s268 + $0x8] sm:$0xf] %v2123
        %2247 = vst [vmem:[%s268 + $0xc] sm:$0xf] %v2126
        %2248 = vst [vmem:[%s268 + $0x10] sm:$0xf] %v2129
        %2249 = vst [vmem:[%s268 + $0x14] sm:$0xf] %v2132
        %2250 = vst [vmem:[%s268 + $0x18] sm:$0xf] %v2135
        %2251 = vst [vmem:[%s268 + $0x1c] sm:$0xf] %v2138
        %2252 = vst [vmem:[%s268 + $0x20] sm:$0xf] %v2141
        %2253 = vst [vmem:[%s268 + $0x24] sm:$0xf] %v2144
        %2254 = vst [vmem:[%s268 + $0x28] sm:$0xf] %v2147
        %2255 = vst [vmem:[%s268 + $0x2c] sm:$0xf] %v2150
        %2256 = vst [vmem:[%s268 + $0x30] sm:$0xf] %v2153
        %2257 = vst [vmem:[%s268 + $0x34] sm:$0xf] %v2156
        %2258 = vst [vmem:[%s268 + $0x38] sm:$0xf] %v2159
        %2259 = vst [vmem:[%s268 + $0x3c] sm:$0xf] %v2162
        %2260 = vst [vmem:[%s268 + $0x40] sm:$0xf] %v2165
        %2261 = vst [vmem:[%s268 + $0x44] sm:$0xf] %v2168
        %2262 = vst [vmem:[%s268 + $0x48] sm:$0xf] %v2171
        %2263 = vst [vmem:[%s268 + $0x4c] sm:$0xf] %v2174
        %2264 = vst [vmem:[%s268 + $0x50] sm:$0xf] %v2177
        %2265 = vst [vmem:[%s268 + $0x54] sm:$0xf] %v2180
        %2266 = vst [vmem:[%s268 + $0x58] sm:$0xf] %v2183
        %2267 = vst [vmem:[%s268 + $0x5c] sm:$0xf] %v2186
        %2268 = vst [vmem:[%s268 + $0x60] sm:$0xf] %v2189
        %2269 = vst [vmem:[%s268 + $0x64] sm:$0xf] %v2192
        %2270 = vst [vmem:[%s268 + $0x68] sm:$0xf] %v2195
        %2271 = vst [vmem:[%s268 + $0x6c] sm:$0xf] %v2198
        %2272 = vst [vmem:[%s268 + $0x70] sm:$0xf] %v2201
        %2273 = vst [vmem:[%s268 + $0x74] sm:$0xf] %v2204
        %2274 = vst [vmem:[%s268 + $0x78] sm:$0xf] %v2207
        %2275 = vst [vmem:[%s268 + $0x7c] sm:$0xf] %v2210
        %2276 = vst [vmem:[%s275] sm:$0xf] %v2118
        %2277 = vst [vmem:[%s275 + $0x4] sm:$0xf] %v2121
        %2278 = vst [vmem:[%s275 + $0x8] sm:$0xf] %v2124
        %2279 = vst [vmem:[%s275 + $0xc] sm:$0xf] %v2127
        %2280 = vst [vmem:[%s275 + $0x10] sm:$0xf] %v2130
        %2281 = vst [vmem:[%s275 + $0x14] sm:$0xf] %v2133
        %2282 = vst [vmem:[%s275 + $0x18] sm:$0xf] %v2136
        %2283 = vst [vmem:[%s275 + $0x1c] sm:$0xf] %v2139
        %2284 = vst [vmem:[%s275 + $0x20] sm:$0xf] %v2142
        %2285 = vst [vmem:[%s275 + $0x24] sm:$0xf] %v2145
        %2286 = vst [vmem:[%s275 + $0x28] sm:$0xf] %v2148
        %2287 = vst [vmem:[%s275 + $0x2c] sm:$0xf] %v2151
        %2288 = vst [vmem:[%s275 + $0x30] sm:$0xf] %v2154
        %2289 = vst [vmem:[%s275 + $0x34] sm:$0xf] %v2157
        %2290 = vst [vmem:[%s275 + $0x38] sm:$0xf] %v2160
        %2291 = vst [vmem:[%s275 + $0x3c] sm:$0xf] %v2163
        %2292 = vst [vmem:[%s275 + $0x40] sm:$0xf] %v2166
        %2293 = vst [vmem:[%s275 + $0x44] sm:$0xf] %v2169
        %2294 = vst [vmem:[%s275 + $0x48] sm:$0xf] %v2172
        %2295 = vst [vmem:[%s275 + $0x4c] sm:$0xf] %v2175
        %2296 = vst [vmem:[%s275 + $0x50] sm:$0xf] %v2178
        %2297 = vst [vmem:[%s275 + $0x54] sm:$0xf] %v2181
        %2298 = vst [vmem:[%s275 + $0x58] sm:$0xf] %v2184
        %2299 = vst [vmem:[%s275 + $0x5c] sm:$0xf] %v2187
        %2300 = vst [vmem:[%s275 + $0x60] sm:$0xf] %v2190
        %2301 = vst [vmem:[%s275 + $0x64] sm:$0xf] %v2193
        %2302 = vst [vmem:[%s275 + $0x68] sm:$0xf] %v2196
        %2303 = vst [vmem:[%s275 + $0x6c] sm:$0xf] %v2199
        %2304 = vst [vmem:[%s275 + $0x70] sm:$0xf] %v2202
        %2305 = vst [vmem:[%s275 + $0x74] sm:$0xf] %v2205
        %2306 = vst [vmem:[%s275 + $0x78] sm:$0xf] %v2208
        %2307 = vst [vmem:[%s275 + $0x7c] sm:$0xf] %v2211
        %v2340 = vrot.slane %v2116, 4
        %v2341 = vrot.slane %v2119, 4
        %v2342 = vrot.slane %v2122, 4
        %v2343 = vrot.slane %v2125, 4
        %v2344 = vrot.slane %v2128, 4
        %v2345 = vrot.slane %v2131, 4
        %v2346 = vrot.slane %v2134, 4
        %v2347 = vrot.slane %v2137, 4
        %v2348 = vrot.slane %v2140, 4
        %v2349 = vrot.slane %v2143, 4
        %v2350 = vrot.slane %v2146, 4
        %v2351 = vrot.slane %v2149, 4
        %v2352 = vrot.slane %v2152, 4
        %v2353 = vrot.slane %v2155, 4
        %v2354 = vrot.slane %v2158, 4
        %v2355 = vrot.slane %v2161, 4
        %v2356 = vrot.slane %v2164, 4
        %v2357 = vrot.slane %v2167, 4
        %v2358 = vrot.slane %v2170, 4
        %v2359 = vrot.slane %v2173, 4
        %v2360 = vrot.slane %v2176, 4
        %v2361 = vrot.slane %v2179, 4
        %v2362 = vrot.slane %v2182, 4
        %v2363 = vrot.slane %v2185, 4
        %v2364 = vrot.slane %v2188, 4
        %v2365 = vrot.slane %v2191, 4
        %v2366 = vrot.slane %v2194, 4
        %v2367 = vrot.slane %v2197, 4
        %v2368 = vrot.slane %v2200, 4
        %v2369 = vrot.slane %v2203, 4
        %v2370 = vrot.slane %v2206, 4
        %v2371 = vrot.slane %v2209, 4
        %s2404 = scalar_lea.vmem %s261, 128 [#allocation7]
        %2405 = vst [vmem:[%s2404] sm:$0xf] %v2340
        %2406 = vst [vmem:[%s2404 + $0x4] sm:$0xf] %v2341
        %2407 = vst [vmem:[%s2404 + $0x8] sm:$0xf] %v2342
        %2408 = vst [vmem:[%s2404 + $0xc] sm:$0xf] %v2343
        %2409 = vst [vmem:[%s2404 + $0x10] sm:$0xf] %v2344
        %2410 = vst [vmem:[%s2404 + $0x14] sm:$0xf] %v2345
        %2411 = vst [vmem:[%s2404 + $0x18] sm:$0xf] %v2346
        %2412 = vst [vmem:[%s2404 + $0x1c] sm:$0xf] %v2347
        %2413 = vst [vmem:[%s2404 + $0x20] sm:$0xf] %v2348
        %2414 = vst [vmem:[%s2404 + $0x24] sm:$0xf] %v2349
        %2415 = vst [vmem:[%s2404 + $0x28] sm:$0xf] %v2350
        %2416 = vst [vmem:[%s2404 + $0x2c] sm:$0xf] %v2351
        %2417 = vst [vmem:[%s2404 + $0x30] sm:$0xf] %v2352
        %2418 = vst [vmem:[%s2404 + $0x34] sm:$0xf] %v2353
        %2419 = vst [vmem:[%s2404 + $0x38] sm:$0xf] %v2354
        %2420 = vst [vmem:[%s2404 + $0x3c] sm:$0xf] %v2355
        %2421 = vst [vmem:[%s2404 + $0x40] sm:$0xf] %v2356
        %2422 = vst [vmem:[%s2404 + $0x44] sm:$0xf] %v2357
        %2423 = vst [vmem:[%s2404 + $0x48] sm:$0xf] %v2358
        %2424 = vst [vmem:[%s2404 + $0x4c] sm:$0xf] %v2359
        %2425 = vst [vmem:[%s2404 + $0x50] sm:$0xf] %v2360
        %2426 = vst [vmem:[%s2404 + $0x54] sm:$0xf] %v2361
        %2427 = vst [vmem:[%s2404 + $0x58] sm:$0xf] %v2362
        %2428 = vst [vmem:[%s2404 + $0x5c] sm:$0xf] %v2363
        %2429 = vst [vmem:[%s2404 + $0x60] sm:$0xf] %v2364
        %2430 = vst [vmem:[%s2404 + $0x64] sm:$0xf] %v2365
        %2431 = vst [vmem:[%s2404 + $0x68] sm:$0xf] %v2366
        %2432 = vst [vmem:[%s2404 + $0x6c] sm:$0xf] %v2367
        %2433 = vst [vmem:[%s2404 + $0x70] sm:$0xf] %v2368
        %2434 = vst [vmem:[%s2404 + $0x74] sm:$0xf] %v2369
        %2435 = vst [vmem:[%s2404 + $0x78] sm:$0xf] %v2370
        %2436 = vst [vmem:[%s2404 + $0x7c] sm:$0xf] %v2371
        %v2469 = vrot.slane %v2117, 4
        %v2470 = vrot.slane %v2120, 4
        %v2471 = vrot.slane %v2123, 4
        %v2472 = vrot.slane %v2126, 4
        %v2473 = vrot.slane %v2129, 4
        %v2474 = vrot.slane %v2132, 4
        %v2475 = vrot.slane %v2135, 4
        %v2476 = vrot.slane %v2138, 4
        %v2477 = vrot.slane %v2141, 4
        %v2478 = vrot.slane %v2144, 4
        %v2479 = vrot.slane %v2147, 4
        %v2480 = vrot.slane %v2150, 4
        %v2481 = vrot.slane %v2153, 4
        %v2482 = vrot.slane %v2156, 4
        %v2483 = vrot.slane %v2159, 4
        %v2484 = vrot.slane %v2162, 4
        %v2485 = vrot.slane %v2165, 4
        %v2486 = vrot.slane %v2168, 4
        %v2487 = vrot.slane %v2171, 4
        %v2488 = vrot.slane %v2174, 4
        %v2489 = vrot.slane %v2177, 4
        %v2490 = vrot.slane %v2180, 4
        %v2491 = vrot.slane %v2183, 4
        %v2492 = vrot.slane %v2186, 4
        %v2493 = vrot.slane %v2189, 4
        %v2494 = vrot.slane %v2192, 4
        %v2495 = vrot.slane %v2195, 4
        %v2496 = vrot.slane %v2198, 4
        %v2497 = vrot.slane %v2201, 4
        %v2498 = vrot.slane %v2204, 4
        %v2499 = vrot.slane %v2207, 4
        %v2500 = vrot.slane %v2210, 4
        %s2533 = scalar_lea.vmem %s268, 128 [#allocation8]
        %2534 = vst [vmem:[%s2533] sm:$0xf] %v2469
        %2535 = vst [vmem:[%s2533 + $0x4] sm:$0xf] %v2470
        %2536 = vst [vmem:[%s2533 + $0x8] sm:$0xf] %v2471
        %2537 = vst [vmem:[%s2533 + $0xc] sm:$0xf] %v2472
        %2538 = vst [vmem:[%s2533 + $0x10] sm:$0xf] %v2473
        %2539 = vst [vmem:[%s2533 + $0x14] sm:$0xf] %v2474
        %2540 = vst [vmem:[%s2533 + $0x18] sm:$0xf] %v2475
        %2541 = vst [vmem:[%s2533 + $0x1c] sm:$0xf] %v2476
        %2542 = vst [vmem:[%s2533 + $0x20] sm:$0xf] %v2477
        %2543 = vst [vmem:[%s2533 + $0x24] sm:$0xf] %v2478
        %2544 = vst [vmem:[%s2533 + $0x28] sm:$0xf] %v2479
        %2545 = vst [vmem:[%s2533 + $0x2c] sm:$0xf] %v2480
        %2546 = vst [vmem:[%s2533 + $0x30] sm:$0xf] %v2481
        %2547 = vst [vmem:[%s2533 + $0x34] sm:$0xf] %v2482
        %2548 = vst [vmem:[%s2533 + $0x38] sm:$0xf] %v2483
        %2549 = vst [vmem:[%s2533 + $0x3c] sm:$0xf] %v2484
        %2550 = vst [vmem:[%s2533 + $0x40] sm:$0xf] %v2485
        %2551 = vst [vmem:[%s2533 + $0x44] sm:$0xf] %v2486
        %2552 = vst [vmem:[%s2533 + $0x48] sm:$0xf] %v2487
        %2553 = vst [vmem:[%s2533 + $0x4c] sm:$0xf] %v2488
        %2554 = vst [vmem:[%s2533 + $0x50] sm:$0xf] %v2489
        %2555 = vst [vmem:[%s2533 + $0x54] sm:$0xf] %v2490
        %2556 = vst [vmem:[%s2533 + $0x58] sm:$0xf] %v2491
        %2557 = vst [vmem:[%s2533 + $0x5c] sm:$0xf] %v2492
        %2558 = vst [vmem:[%s2533 + $0x60] sm:$0xf] %v2493
        %2559 = vst [vmem:[%s2533 + $0x64] sm:$0xf] %v2494
        %2560 = vst [vmem:[%s2533 + $0x68] sm:$0xf] %v2495
        %2561 = vst [vmem:[%s2533 + $0x6c] sm:$0xf] %v2496
        %2562 = vst [vmem:[%s2533 + $0x70] sm:$0xf] %v2497
        %2563 = vst [vmem:[%s2533 + $0x74] sm:$0xf] %v2498
        %2564 = vst [vmem:[%s2533 + $0x78] sm:$0xf] %v2499
        %2565 = vst [vmem:[%s2533 + $0x7c] sm:$0xf] %v2500
        %v2598 = vrot.slane %v2118, 4
        %v2599 = vrot.slane %v2121, 4
        %v2600 = vrot.slane %v2124, 4
        %v2601 = vrot.slane %v2127, 4
        %v2602 = vrot.slane %v2130, 4
        %v2603 = vrot.slane %v2133, 4
        %v2604 = vrot.slane %v2136, 4
        %v2605 = vrot.slane %v2139, 4
        %v2606 = vrot.slane %v2142, 4
        %v2607 = vrot.slane %v2145, 4
        %v2608 = vrot.slane %v2148, 4
        %v2609 = vrot.slane %v2151, 4
        %v2610 = vrot.slane %v2154, 4
        %v2611 = vrot.slane %v2157, 4
        %v2612 = vrot.slane %v2160, 4
        %v2613 = vrot.slane %v2163, 4
        %v2614 = vrot.slane %v2166, 4
        %v2615 = vrot.slane %v2169, 4
        %v2616 = vrot.slane %v2172, 4
        %v2617 = vrot.slane %v2175, 4
        %v2618 = vrot.slane %v2178, 4
        %v2619 = vrot.slane %v2181, 4
        %v2620 = vrot.slane %v2184, 4
        %v2621 = vrot.slane %v2187, 4
        %v2622 = vrot.slane %v2190, 4
        %v2623 = vrot.slane %v2193, 4
        %v2624 = vrot.slane %v2196, 4
        %v2625 = vrot.slane %v2199, 4
        %v2626 = vrot.slane %v2202, 4
        %v2627 = vrot.slane %v2205, 4
        %v2628 = vrot.slane %v2208, 4
        %v2629 = vrot.slane %v2211, 4
        %s2662 = scalar_lea.vmem %s275, 128 [#allocation10]
        %2663 = vst [vmem:[%s2662] sm:$0xf] %v2598
        %2664 = vst [vmem:[%s2662 + $0x4] sm:$0xf] %v2599
        %2665 = vst [vmem:[%s2662 + $0x8] sm:$0xf] %v2600
        %2666 = vst [vmem:[%s2662 + $0xc] sm:$0xf] %v2601
        %2667 = vst [vmem:[%s2662 + $0x10] sm:$0xf] %v2602
        %2668 = vst [vmem:[%s2662 + $0x14] sm:$0xf] %v2603
        %2669 = vst [vmem:[%s2662 + $0x18] sm:$0xf] %v2604
        %2670 = vst [vmem:[%s2662 + $0x1c] sm:$0xf] %v2605
        %2671 = vst [vmem:[%s2662 + $0x20] sm:$0xf] %v2606
        %2672 = vst [vmem:[%s2662 + $0x24] sm:$0xf] %v2607
        %2673 = vst [vmem:[%s2662 + $0x28] sm:$0xf] %v2608
        %2674 = vst [vmem:[%s2662 + $0x2c] sm:$0xf] %v2609
        %2675 = vst [vmem:[%s2662 + $0x30] sm:$0xf] %v2610
        %2676 = vst [vmem:[%s2662 + $0x34] sm:$0xf] %v2611
        %2677 = vst [vmem:[%s2662 + $0x38] sm:$0xf] %v2612
        %2678 = vst [vmem:[%s2662 + $0x3c] sm:$0xf] %v2613
        %2679 = vst [vmem:[%s2662 + $0x40] sm:$0xf] %v2614
        %2680 = vst [vmem:[%s2662 + $0x44] sm:$0xf] %v2615
        %2681 = vst [vmem:[%s2662 + $0x48] sm:$0xf] %v2616
        %2682 = vst [vmem:[%s2662 + $0x4c] sm:$0xf] %v2617
        %2683 = vst [vmem:[%s2662 + $0x50] sm:$0xf] %v2618
        %2684 = vst [vmem:[%s2662 + $0x54] sm:$0xf] %v2619
        %2685 = vst [vmem:[%s2662 + $0x58] sm:$0xf] %v2620
        %2686 = vst [vmem:[%s2662 + $0x5c] sm:$0xf] %v2621
        %2687 = vst [vmem:[%s2662 + $0x60] sm:$0xf] %v2622
        %2688 = vst [vmem:[%s2662 + $0x64] sm:$0xf] %v2623
        %2689 = vst [vmem:[%s2662 + $0x68] sm:$0xf] %v2624
        %2690 = vst [vmem:[%s2662 + $0x6c] sm:$0xf] %v2625
        %2691 = vst [vmem:[%s2662 + $0x70] sm:$0xf] %v2626
        %2692 = vst [vmem:[%s2662 + $0x74] sm:$0xf] %v2627
        %2693 = vst [vmem:[%s2662 + $0x78] sm:$0xf] %v2628
        %2694 = vst [vmem:[%s2662 + $0x7c] sm:$0xf] %v2629
        %s2695 = sand.u32 %s97, 1
        %s2696 = scalar_lea.sflag [#allocation4], %s2695
        %s2697 = sand.u32 %s97, 1
        %s2698 = smul.addr %s2697, 256
        %s2699 = scalar_lea.vmem [#allocation7], %s2698
        %s2700 = sand.u32 %s26, 1
        %s2701 = scalar_lea.sflag [#allocation9], %s2700
        %s2702 = sand.u32 %s125, 1
        %s2703 = smul.addr %s2702, 256
        %s2704 = scalar_lea.vmem [#allocation8], %s2703
        %s2705 = sand.u32 %s26, 1
        %s2706 = scalar_lea.sflag [#allocation9], %s2705
        %s2707 = sand.u32 %s153, 1
        %s2708 = smul.addr %s2707, 256
        %s2709 = scalar_lea.vmem [#allocation10], %s2708
        // Predicated region
        $region37: #{tpu_custom_call.1} parent=27 // pred_check
          %p2710 = pneg %p107
        $region38: #{tpu_custom_call.1} parent=27 // pred_check_branch
          %2712 = sbr.rel (%p2710) target = $region40
        $region39: #{tpu_custom_call.1} parent=27 // pred_region
          #allocation12 [shape = 'u32[6]{0}', space=smem, size = 0x18, scoped, tag = 'DMA stride descriptor']
          %s2713 = smul.u32 32, %s31
          %2715 = vsyncadd %s2696, 0
          %s2716 = smul.addr %s30, 128
          %s2717 = sadd.s32 %s2713, %s2716
          %s2718 = smul.addr %s2717, 4
          %s2719 = scalar_lea.hbm %s2, %s2718
          %s2721 = sshll.u32 1, 14
          %s2722 = sxor.u32 4294967295, %s2721
          %s2725 = sshll.u32 7, 18
          %s2726 = sxor.u32 4294967295, %s2725
          %s2727 = sand.u32 0, %s2726
          %s2729 = sor.u32 %s2727, 0
          %s2730 = sshll.u32 %s2699, 4
          %s2731 = int_to_ptr.vmem [resolvable:$true] %s2730
          %s2732 = sshll.u32 %s2719, 4
          %s2733 = int_to_ptr.hbm [resolvable:$true] %s2732
          %2739 = sst [smem:[#allocation12]] 2048
          %s2740 = scalar_lea.smem [#allocation12], 1
          %2741 = sst [smem:[%s2740]] 4096
          %s2742 = scalar_lea.smem [#allocation12], 2
          %2743 = sst [smem:[%s2742]] 32
          %s2744 = scalar_lea.smem [#allocation12], 3
          %2745 = sst [smem:[%s2744]] 64
          %s2746 = scalar_lea.smem [#allocation12], 4
          %2747 = sst [smem:[%s2746]] 64
          %s2748 = scalar_lea.smem [#allocation12], 5
          %2749 = sst [smem:[%s2748]] 4
          %2751 = dma.general %s2731, 4096, %s2733, %s2696, [#allocation11], [#allocation12], %s2729, 0
        $region40: #{tpu_custom_call.1} parent=27 // pred_fallthru
          _
        // Predicated region
        $region41: #{tpu_custom_call.1} parent=27 // pred_check
          %p2752 = pneg %p135
        $region42: #{tpu_custom_call.1} parent=27 // pred_check_branch
          %2754 = sbr.rel (%p2752) target = $region44
        $region43: #{tpu_custom_call.1} parent=27 // pred_region
          #allocation14 [shape = 'u32[6]{0}', space=smem, size = 0x18, scoped, tag = 'DMA stride descriptor']
          %s2755 = smul.u32 32, %s31
          %2757 = vsyncadd %s2701, 0
          %s2758 = smul.addr %s30, 128
          %s2759 = sadd.s32 %s2755, %s2758
          %s2760 = smul.addr %s2759, 4
          %s2761 = scalar_lea.hbm %s3, %s2760
          %s2763 = sshll.u32 1, 14
          %s2764 = sxor.u32 4294967295, %s2763
          %s2767 = sshll.u32 7, 18
          %s2768 = sxor.u32 4294967295, %s2767
          %s2769 = sand.u32 0, %s2768
          %s2771 = sor.u32 %s2769, 0
          %s2772 = sshll.u32 %s2704, 4
          %s2773 = int_to_ptr.vmem [resolvable:$true] %s2772
          %s2774 = sshll.u32 %s2761, 4
          %s2775 = int_to_ptr.hbm [resolvable:$true] %s2774
          %2781 = sst [smem:[#allocation14]] 2048
          %s2782 = scalar_lea.smem [#allocation14], 1
          %2783 = sst [smem:[%s2782]] 4096
          %s2784 = scalar_lea.smem [#allocation14], 2
          %2785 = sst [smem:[%s2784]] 32
          %s2786 = scalar_lea.smem [#allocation14], 3
          %2787 = sst [smem:[%s2786]] 64
          %s2788 = scalar_lea.smem [#allocation14], 4
          %2789 = sst [smem:[%s2788]] 64
          %s2790 = scalar_lea.smem [#allocation14], 5
          %2791 = sst [smem:[%s2790]] 4
          %2793 = dma.general %s2773, 4096, %s2775, %s2701, [#allocation13], [#allocation14], %s2771, 0
        $region44: #{tpu_custom_call.1} parent=27 // pred_fallthru
          _
        // Predicated region
        $region45: #{tpu_custom_call.1} parent=27 // pred_check
          %p2794 = pneg %p163
        $region46: #{tpu_custom_call.1} parent=27 // pred_check_branch
          %2796 = sbr.rel (%p2794) target = $region48
        $region47: #{tpu_custom_call.1} parent=27 // pred_region
          #allocation16 [shape = 'u32[6]{0}', space=smem, size = 0x18, scoped, tag = 'DMA stride descriptor']
          %s2797 = smul.u32 32, %s31
          %2799 = vsyncadd %s2706, 0
          %s2800 = smul.addr %s30, 128
          %s2801 = sadd.s32 %s2797, %s2800
          %s2802 = smul.addr %s2801, 4
          %s2803 = scalar_lea.hbm %s4, %s2802
          %s2805 = sshll.u32 1, 14
          %s2806 = sxor.u32 4294967295, %s2805
          %s2809 = sshll.u32 7, 18
          %s2810 = sxor.u32 4294967295, %s2809
          %s2811 = sand.u32 0, %s2810
          %s2813 = sor.u32 %s2811, 0
          %s2814 = sshll.u32 %s2709, 4
          %s2815 = int_to_ptr.vmem [resolvable:$true] %s2814
          %s2816 = sshll.u32 %s2803, 4
          %s2817 = int_to_ptr.hbm [resolvable:$true] %s2816
          %2823 = sst [smem:[#allocation16]] 2048
          %s2824 = scalar_lea.smem [#allocation16], 1
          %2825 = sst [smem:[%s2824]] 4096
          %s2826 = scalar_lea.smem [#allocation16], 2
          %2827 = sst [smem:[%s2826]] 32
          %s2828 = scalar_lea.smem [#allocation16], 3
          %2829 = sst [smem:[%s2828]] 64
          %s2830 = scalar_lea.smem [#allocation16], 4
          %2831 = sst [smem:[%s2830]] 64
          %s2832 = scalar_lea.smem [#allocation16], 5
          %2833 = sst [smem:[%s2832]] 4
          %2835 = dma.general %s2815, 4096, %s2817, %s2706, [#allocation15], [#allocation16], %s2813, 0
        $region48: #{tpu_custom_call.1} parent=27 // pred_fallthru
          _
      $region28: #{tpu_custom_call.1} parent=5 // pred_fallthru
        _
      %p2836 = scmp.le.s32.totalorder 2, %s21
      // Predicated region
      $region49: #{tpu_custom_call.1} parent=5 // pred_check
        %p2837 = pneg %p2836
      $region50: #{tpu_custom_call.1} parent=5 // pred_check_branch
        %2839 = sbr.rel (%p2837) target = $region52
      $region51: #{tpu_custom_call.1} parent=5 // pred_region
        %s2840 = ssub.s32 %s21, 2
        // Predicated region
        $region53: #{tpu_custom_call.1} parent=51 // pred_check
          %p2841 = pneg %p113
        $region54: #{tpu_custom_call.1} parent=51 // pred_check_branch
          %2843 = sbr.rel (%p2841) target = $region56
        $region55: #{tpu_custom_call.1} parent=51 // pred_region
          %s2844 = sand.u32 %s98, 1
          %s2845 = scalar_lea.sflag [#allocation4], %s2844
          %s2846 = sand.u32 %s98, 1
          %s2847 = smul.addr %s2846, 256
          %s2848 = scalar_lea.vmem [#allocation7], %s2847
          %2850 = dma.done %s2845, 4096
        $region56: #{tpu_custom_call.1} parent=51 // pred_fallthru
          _
        // Predicated region
        $region57: #{tpu_custom_call.1} parent=51 // pred_check
          %p2851 = pneg %p141
        $region58: #{tpu_custom_call.1} parent=51 // pred_check_branch
          %2853 = sbr.rel (%p2851) target = $region60
        $region59: #{tpu_custom_call.1} parent=51 // pred_region
          %s2854 = sand.u32 %s27, 1
          %s2855 = scalar_lea.sflag [#allocation9], %s2854
          %s2856 = sand.u32 %s126, 1
          %s2857 = smul.addr %s2856, 256
          %s2858 = scalar_lea.vmem [#allocation8], %s2857
          %2860 = dma.done %s2855, 4096
        $region60: #{tpu_custom_call.1} parent=51 // pred_fallthru
          _
        // Predicated region
        $region61: #{tpu_custom_call.1} parent=51 // pred_check
          %p2861 = pneg %p169
        $region62: #{tpu_custom_call.1} parent=51 // pred_check_branch
          %2863 = sbr.rel (%p2861) target = $region64
        $region63: #{tpu_custom_call.1} parent=51 // pred_region
          %s2864 = sand.u32 %s27, 1
          %s2865 = scalar_lea.sflag [#allocation9], %s2864
          %s2866 = sand.u32 %s154, 1
          %s2867 = smul.addr %s2866, 256
          %s2868 = scalar_lea.vmem [#allocation10], %s2867
          %2870 = dma.done %s2865, 4096
        $region64: #{tpu_custom_call.1} parent=51 // pred_fallthru
          _
      $region52: #{tpu_custom_call.1} parent=5 // pred_fallthru
        _
    $region6: #{tpu_custom_call.1} parent=1 // loop_footer
      %s25 = sadd.s32 1, %s21
    $region7: #{tpu_custom_call.1} parent=1 // loop_footer_branch
      %20 = sbr.rel target = $region3
    $region8: #{tpu_custom_call.1} parent=1 // loop_exit
      _
    %2871 = vsyncpa [#allocation3], 1
    %s2872 = scalar_lea.sflag [#allocation3], 1
    %2873 = vsyncpa %s2872, 1
    %2874 = vsyncpa [#allocation6], 1
    %2875 = vsyncpa [#allocation4], 1
    %s2876 = scalar_lea.sflag [#allocation4], 1
    %2877 = vsyncpa %s2876, 1
    %2878 = vsyncpa [#allocation9], 1
    %s2879 = scalar_lea.sflag [#allocation9], 1
    %2880 = vsyncpa %s2879, 1

</llo_original>
